<compile_context>
chip_gen: v5e
topology: v5e:2x2
jax: 0.10.0
libtpu: 0.0.40
codegen_flags: <defaults>
</compile_context>

<pallas_src>
import functools

import numpy as np

import jax
import jax.numpy as jnp
from jax import lax
from jax.experimental import pallas as pl
from jax.experimental.pallas import tpu as pltpu


_SUB = 8          # innermost unrolled time steps == one sublane tile
_MAX_CHUNK = 256  # max time steps per grid step (bounds per-chunk VMEM)


def _round_up(x: int, m: int) -> int:
    return ((x + m - 1) // m) * m


def _split_bf16(x):
    """Split f32 -> (hi, lo) bf16 pair with hi + lo ~= x (for 3-pass 'HIGH' matmuls)."""
    hi = x.astype(jnp.bfloat16)
    lo = (x - hi.astype(jnp.float32)).astype(jnp.bfloat16)
    return hi, lo


def _sum_product_kernel(uncert, n_sub, tt_block,
                        tT_ref, probs_ref, bins_ref, state0_ref,
                        out_ref, stats_ref, state_scr):
    """One time chunk of the online sum-product recurrence + fused statistics.

    tT_ref    : (dim_pad, dim_pad) transposed transition prior (resident)
    probs_ref : (tt_block, dim_pad) observation distributions for this chunk
    bins_ref  : (1, dim_pad)        bin -> bpm mapping (padded lanes are 0)
    state0_ref: (1, dim_pad)        initial belief state
    out_ref   : (tt_block, dim_pad) posterior belief per step (this chunk)
    stats_ref : (8, tt_block)       row 0 = E[x], row 1 = uncertainty (lane-dense)
    state_scr : (1, dim_pad)        VMEM scratch carrying the state across chunks
    """
    @pl.when(pl.program_id(0) == 0)
    def _init():
        state_scr[...] = state0_ref[...]

    # Loop-invariant operands, hoisted: 3-pass bf16 split of T^T (HIGH-equivalent).
    tT = tT_ref[...]
    tT_hi, tT_lo = _split_bf16(tT)
    bins = bins_ref[...]                                   # (1, dim_pad)

    def sub_body(sc, state):
        base = sc * _SUB
        if not isinstance(base, int):
            base = pl.multiple_of(base, _SUB)
        pblock = probs_ref[pl.ds(base, _SUB), :]           # (8, dim_pad)
        s = state
        rows = []
        for u in range(_SUB):                              # fully unrolled
            # p_prior = T @ s == s @ T^T  on the MXU, 3 bf16 passes (~Precision.HIGH)
            s_hi, s_lo = _split_bf16(s)
            p_prior = (
                jnp.dot(s_hi, tT_hi, preferred_element_type=jnp.float32)
                + jnp.dot(s_hi, tT_lo, preferred_element_type=jnp.float32)
                + jnp.dot(s_lo, tT_hi, preferred_element_type=jnp.float32)
            )                                              # (1, dim_pad) f32
            p_new = p_prior * pblock[u:u + 1, :]
            denom = jnp.sum(p_new, keepdims=True)          # (1, 1)
            inv = pl.reciprocal(denom, approx=True)        # EUP slot
            inv = inv * (2.0 - denom * inv)                # Newton step -> ~f32 exact
            s = p_new * inv
            rows.append(s)
        # One lane/sublane-dense (8, dim_pad) tile store per 8 steps.
        out_ref[pl.ds(base, _SUB), :] = jnp.concatenate(rows, axis=0)
        return s

    state = state_scr[...]
    if n_sub == 1:
        state = sub_body(0, state)
    else:
        state = lax.fori_loop(0, n_sub, sub_body, state, unroll=2)
    state_scr[...] = state

    # Fused per-chunk statistics, produced lane-dense as (1, tt_block) rows via MXU
    # dots that contract the (padded) frequency axis.  Off the serial critical path,
    # so HIGHEST precision is used here.
    block = out_ref[...]                                   # (tt_block, dim_pad)
    cdims = (((1,), (1,)), ((), ()))
    ex_row = lax.dot_general(bins, block, cdims,
                             precision=lax.Precision.HIGHEST,
                             preferred_element_type=jnp.float32)      # (1, tt_block)
    if uncert == "entropy":
        plogp = block * jnp.log(block + 1e-10)             # EUP log; 0-lanes stay 0
        ones = jnp.ones_like(bins)
        unc_row = -lax.dot_general(ones, plogp, cdims,
                                   precision=lax.Precision.HIGHEST,
                                   preferred_element_type=jnp.float32)
    else:  # "std"
        ex2_row = lax.dot_general(bins * bins, block, cdims,
                                  precision=lax.Precision.HIGHEST,
                                  preferred_element_type=jnp.float32)
        unc_row = jnp.sqrt(jnp.maximum(ex2_row - ex_row * ex_row, 0.0))
    pad_rows = jnp.zeros((8 - 2, tt_block), jnp.float32)
    stats_ref[...] = jnp.concatenate([ex_row, unc_row, pad_rows], axis=0)


def _prior_layer_forward_online(probs, transition_prior, bins, state, uncert):
    """Runs the Pallas kernel. Returns (prior_probs, E_x, uncertainty)."""
    probs = jnp.asarray(probs, jnp.float32)
    seq_len, dim = probs.shape

    dim_pad = _round_up(dim, 128)
    tt_block = min(_round_up(seq_len, _SUB), _MAX_CHUNK)   # multiple of 8
    seq_pad = _round_up(seq_len, tt_block)
    n_chunks = seq_pad // tt_block
    n_sub = tt_block // _SUB

    # Zero-pad the frequency axis to a full 128-lane width.  Padded *time* rows get
    # a uniform observation so the recurrence stays finite (they are discarded).
    probs_p = jnp.zeros((seq_pad, dim_pad), jnp.float32)
    probs_p = probs_p.at[:seq_len, :dim].set(probs)
    if seq_pad > seq_len:
        probs_p = probs_p.at[seq_len:, :dim].set(1.0 / dim)

    tT = jnp.zeros((dim_pad, dim_pad), jnp.float32)
    tT = tT.at[:dim, :dim].set(jnp.asarray(transition_prior, jnp.float32).T)

    bins_p = jnp.zeros((1, dim_pad), jnp.float32)
    bins_p = bins_p.at[0, :dim].set(jnp.asarray(bins, jnp.float32))

    if state is None:
        state = jnp.ones((dim,), jnp.float32) / dim
    state_p = jnp.zeros((1, dim_pad), jnp.float32)
    state_p = state_p.at[0, :dim].set(jnp.asarray(state, jnp.float32).reshape(dim))

    kernel = functools.partial(_sum_product_kernel, uncert, n_sub, tt_block)

    out_full, stats = pl.pallas_call(
        kernel,
        grid=(n_chunks,),
        in_specs=[
            pl.BlockSpec((dim_pad, dim_pad), lambda c: (0, 0)),    # T^T (resident)
            pl.BlockSpec((tt_block, dim_pad), lambda c: (c, 0)),   # probs chunk
            pl.BlockSpec((1, dim_pad), lambda c: (0, 0)),          # bins
            pl.BlockSpec((1, dim_pad), lambda c: (0, 0)),          # initial state
        ],
        out_specs=(
            pl.BlockSpec((tt_block, dim_pad), lambda c: (c, 0)),   # posterior chunk
            pl.BlockSpec((8, tt_block), lambda c: (c, 0)),         # [E_x; unc] slab
        ),
        out_shape=(
            jax.ShapeDtypeStruct((seq_pad, dim_pad), jnp.float32),
            jax.ShapeDtypeStruct((n_chunks * 8, tt_block), jnp.float32),
        ),
        scratch_shapes=[pltpu.VMEM((1, dim_pad), jnp.float32)],    # carried state
        compiler_params=pltpu.CompilerParams(
            dimension_semantics=("arbitrary",)),                   # serial recurrence
    )(tT, probs_p, bins_p, state_p)

    prior_probs = out_full[:seq_len, :dim]
    stats = stats.reshape(n_chunks, 8, tt_block)
    ex = stats[:, 0, :].reshape(-1)[:seq_len]
    unc = stats[:, 1, :].reshape(-1)[:seq_len]
    return prior_probs, ex, unc


def prior_layer_online(probs, transition_prior, bins, state=None,
                       return_probs=True, uncert="entropy"):
    """JAX/Pallas equivalent of PriorLayer.forward with online=True."""
    prior_probs, ex, unc = _prior_layer_forward_online(
        probs, transition_prior, bins, state, uncert)
    if return_probs:
        return prior_probs, unc
    return ex, unc


def _reference_forward(probs, T, bins):
    """Pure numpy (float64) reference mirroring the torch module (online branch)."""
    probs = np.asarray(probs, np.float64)
    T = np.asarray(T, np.float64)
    bins = np.asarray(bins, np.float64)
    seq_len, dim = probs.shape
    state = np.ones(dim) / dim
    out = np.zeros((seq_len, dim))
    for t in range(seq_len):
        p_prior = T @ state
        p_new = p_prior * probs[t]
        state = p_new / p_new.sum()
        out[t] = state
    ex = np.sum(out * bins[None, :], axis=1)
    ent = -np.sum(out * np.log(out + 1e-10), axis=1)
    ex2 = np.sum(out * bins[None, :] ** 2, axis=1)
    std = np.sqrt(np.maximum(ex2 - ex ** 2, 0.0))
    return out, ex, ent, std


if __name__ == "__main__":
    # Small, deterministic setup consistent with the module.
    dim = 64          # number of frequency bins
    seq_len = 8       # time steps
    min_hz, max_hz = 0.5, 3.5

    # Deterministic synthetic transition prior (Laplace-like kernel on |i-j|),
    # matching the (dim, dim) shape produced by fit_prior_layer.
    idx = np.arange(dim)
    diff = np.abs(idx[:, None] - idx[None, :]).astype(np.float32)
    transition_prior = np.exp(-diff / 3.0).astype(np.float32)

    # bins[i] = min_hz*60 + (max_hz - min_hz)*60 * i / dim
    bins = (min_hz * 60.0
            + (max_hz - min_hz) * 60.0 * np.arange(dim) / dim).astype(np.float32)

    # Input probability distributions (seq_len, dim).
    key = jax.random.PRNGKey(0)
    logits = jax.random.normal(key, (seq_len, dim), dtype=jnp.float32)
    probs = jax.nn.softmax(logits, axis=-1)

    # Online mode: entropy / return_probs=True  and  std / return_probs=False.
    prior_probs, unc_ent = prior_layer_online(
        probs, transition_prior, bins, return_probs=True, uncert="entropy")
    ex, unc_std = prior_layer_online(
        probs, transition_prior, bins, return_probs=False, uncert="std")
    prior_probs = jax.block_until_ready(prior_probs)
    unc_ent = jax.block_until_ready(unc_ent)
    ex = jax.block_until_ready(ex)
    unc_std = jax.block_until_ready(unc_std)

    # Correctness check against a plain float64 reference implementation.
    ref_out, ref_ex, ref_ent, ref_std = _reference_forward(
        np.asarray(probs), transition_prior, bins)
    np.testing.assert_allclose(np.asarray(prior_probs), ref_out,
                               rtol=1e-4, atol=5e-5)
    np.testing.assert_allclose(np.asarray(unc_ent), ref_ent, rtol=1e-4, atol=5e-4)
    np.testing.assert_allclose(np.asarray(ex), ref_ex, rtol=1e-4, atol=1e-2)
    np.testing.assert_allclose(np.asarray(unc_std), ref_std, rtol=1e-3, atol=1e-2)

    print("KERNEL_OK")
</pallas_src>

<mosaic_0001>
module attributes {stable_mosaic.version = 11 : i64} {
  func.func @_sum_product_kernel(%arg0: i32, %arg1: memref<128x128xf32, #tpu.memory_space<vmem>>, %arg2: memref<8x128xf32, #tpu.memory_space<vmem>>, %arg3: memref<1x128xf32, #tpu.memory_space<vmem>>, %arg4: memref<1x128xf32, #tpu.memory_space<vmem>>, %arg5: memref<8x128xf32, #tpu.memory_space<vmem>>, %arg6: memref<8x8xf32, #tpu.memory_space<vmem>>, %arg7: memref<1x128xf32, #tpu.memory_space<vmem>>) attributes {dimension_semantics = [#tpu.dimension_semantics<arbitrary>], iteration_bounds = array<i64: 1>, scalar_prefetch = 0 : i64, scratch_operands = 1 : i64, tpu.core_type = #tpu.core_type<tc>, window_params = [{pipeline_mode = #tpu.pipeline_mode<synchronous>, transform_indices = @transform_0, window_bounds = array<i64: 128, 128>}, {transform_indices = @transform_1, window_bounds = array<i64: 8, 128>}, {pipeline_mode = #tpu.pipeline_mode<synchronous>, transform_indices = @transform_2, window_bounds = array<i64: 1, 128>}, {pipeline_mode = #tpu.pipeline_mode<synchronous>, transform_indices = @transform_3, window_bounds = array<i64: 1, 128>}, {transform_indices = @transform_4, window_bounds = array<i64: 8, 128>}, {transform_indices = @transform_5, window_bounds = array<i64: 8, 8>}]} {
    %c0_i32 = arith.constant 0 : i32
    %0 = arith.cmpi eq, %arg0, %c0_i32 : i32
    %1 = arith.extui %0 : i1 to i32
    %c0_i32_0 = arith.constant 0 : i32
    %2 = arith.cmpi ne, %1, %c0_i32_0 : i32
    scf.if %2 {
      %c0_61 = arith.constant 0 : index
      %c0_62 = arith.constant 0 : index
      %211 = vector.load %arg4[%c0_61, %c0_62] : memref<1x128xf32, #tpu.memory_space<vmem>>, vector<1x128xf32>
      %c0_63 = arith.constant 0 : index
      %c0_64 = arith.constant 0 : index
      %212 = vector.load %arg7[%c0_63, %c0_64] : memref<1x128xf32, #tpu.memory_space<vmem>>, vector<1x128xf32>
      tpu.vector_store %arg7[%c0_63, %c0_64], %211 {strides = array<i32>} : memref<1x128xf32, #tpu.memory_space<vmem>>, vector<1x128xf32>,
    } else {
    }
    %c0 = arith.constant 0 : index
    %c0_1 = arith.constant 0 : index
    %3 = vector.load %arg1[%c0, %c0_1] : memref<128x128xf32, #tpu.memory_space<vmem>>, vector<128x128xf32>
    %4 = arith.truncf %3 : vector<128x128xf32> to vector<128x128xbf16>
    %5 = arith.extf %4 : vector<128x128xbf16> to vector<128x128xf32>
    %6 = arith.subf %3, %5 : vector<128x128xf32>
    %7 = arith.truncf %6 : vector<128x128xf32> to vector<128x128xbf16>
    %c0_2 = arith.constant 0 : index
    %c0_3 = arith.constant 0 : index
    %8 = vector.load %arg3[%c0_2, %c0_3] : memref<1x128xf32, #tpu.memory_space<vmem>>, vector<1x128xf32>
    %c0_4 = arith.constant 0 : index
    %c0_5 = arith.constant 0 : index
    %9 = vector.load %arg7[%c0_4, %c0_5] : memref<1x128xf32, #tpu.memory_space<vmem>>, vector<1x128xf32>
    %c0_6 = arith.constant 0 : index
    %c0_7 = arith.constant 0 : index
    %10 = vector.load %arg2[%c0_6, %c0_7] : memref<8x128xf32, #tpu.memory_space<vmem>>, vector<8x128xf32>
    %11 = arith.truncf %9 : vector<1x128xf32> to vector<1x128xbf16>
    %12 = arith.extf %11 : vector<1x128xbf16> to vector<1x128xf32>
    %13 = arith.subf %9, %12 : vector<1x128xf32>
    %14 = arith.truncf %13 : vector<1x128xf32> to vector<1x128xbf16>
    %cst = arith.constant dense<0.000000e+00> : vector<1x128xf32>
    %15 = tpu.matmul %11, %4, %cst {dimension_numbers = #tpu.dot_dimension_numbers<[1], [0], [0], [1], [0, 0, 1, 1], [], []>} : vector<1x128xbf16>, vector<128x128xbf16>, vector<1x128xf32> -> vector<1x128xf32>
    %cst_8 = arith.constant dense<0.000000e+00> : vector<1x128xf32>
    %16 = tpu.matmul %11, %7, %cst_8 {dimension_numbers = #tpu.dot_dimension_numbers<[1], [0], [0], [1], [0, 0, 1, 1], [], []>} : vector<1x128xbf16>, vector<128x128xbf16>, vector<1x128xf32> -> vector<1x128xf32>
    %17 = arith.addf %15, %16 : vector<1x128xf32>
    %cst_9 = arith.constant dense<0.000000e+00> : vector<1x128xf32>
    %18 = tpu.matmul %14, %4, %cst_9 {dimension_numbers = #tpu.dot_dimension_numbers<[1], [0], [0], [1], [0, 0, 1, 1], [], []>} : vector<1x128xbf16>, vector<128x128xbf16>, vector<1x128xf32> -> vector<1x128xf32>
    %19 = arith.addf %17, %18 : vector<1x128xf32>
    %20 = vector.extract_strided_slice %10 {offsets = [0, 0], sizes = [1, 128], strides = [1, 1]} : vector<8x128xf32> to vector<1x128xf32>
    %21 = arith.mulf %19, %20 : vector<1x128xf32>
    %22 = vector.shape_cast %21 : vector<1x128xf32> to vector<1x1x128xf32>
    %cst_10 = arith.constant dense<0.000000e+00> : vector<1xf32>
    %23 = vector.multi_reduction <add>, %22, %cst_10 [1, 2] : vector<1x1x128xf32> to vector<1xf32>
    %24 = vector.shape_cast %23 : vector<1xf32> to vector<1x1x1xf32>
    %25 = vector.extract %24[0, 0, 0] : f32 from vector<1x1x1xf32>
    %26 = vector.broadcast %25 : f32 to vector<1x1xf32>
    %27 = tpu.reciprocal %26 {approx = true} : vector<1x1xf32> -> vector<1x1xf32>
    %28 = arith.mulf %26, %27 : vector<1x1xf32>
    %cst_11 = arith.constant 2.000000e+00 : f32
    %29 = vector.broadcast %cst_11 : f32 to vector<1x1xf32>
    %30 = arith.subf %29, %28 : vector<1x1xf32>
    %31 = arith.mulf %27, %30 : vector<1x1xf32>
    %32 = vector.broadcast %31 : vector<1x1xf32> to vector<1x128xf32>
    %33 = arith.mulf %21, %32 : vector<1x128xf32>
    %34 = arith.truncf %33 : vector<1x128xf32> to vector<1x128xbf16>
    %35 = arith.extf %34 : vector<1x128xbf16> to vector<1x128xf32>
    %36 = arith.subf %33, %35 : vector<1x128xf32>
    %37 = arith.truncf %36 : vector<1x128xf32> to vector<1x128xbf16>
    %cst_12 = arith.constant dense<0.000000e+00> : vector<1x128xf32>
    %38 = tpu.matmul %34, %4, %cst_12 {dimension_numbers = #tpu.dot_dimension_numbers<[1], [0], [0], [1], [0, 0, 1, 1], [], []>} : vector<1x128xbf16>, vector<128x128xbf16>, vector<1x128xf32> -> vector<1x128xf32>
    %cst_13 = arith.constant dense<0.000000e+00> : vector<1x128xf32>
    %39 = tpu.matmul %34, %7, %cst_13 {dimension_numbers = #tpu.dot_dimension_numbers<[1], [0], [0], [1], [0, 0, 1, 1], [], []>} : vector<1x128xbf16>, vector<128x128xbf16>, vector<1x128xf32> -> vector<1x128xf32>
    %40 = arith.addf %38, %39 : vector<1x128xf32>
    %cst_14 = arith.constant dense<0.000000e+00> : vector<1x128xf32>
    %41 = tpu.matmul %37, %4, %cst_14 {dimension_numbers = #tpu.dot_dimension_numbers<[1], [0], [0], [1], [0, 0, 1, 1], [], []>} : vector<1x128xbf16>, vector<128x128xbf16>, vector<1x128xf32> -> vector<1x128xf32>
    %42 = arith.addf %40, %41 : vector<1x128xf32>
    %43 = vector.extract_strided_slice %10 {offsets = [1, 0], sizes = [1, 128], strides = [1, 1]} : vector<8x128xf32> to vector<1x128xf32>
    %44 = arith.mulf %42, %43 : vector<1x128xf32>
    %45 = vector.shape_cast %44 : vector<1x128xf32> to vector<1x1x128xf32>
    %cst_15 = arith.constant dense<0.000000e+00> : vector<1xf32>
    %46 = vector.multi_reduction <add>, %45, %cst_15 [1, 2] : vector<1x1x128xf32> to vector<1xf32>
    %47 = vector.shape_cast %46 : vector<1xf32> to vector<1x1x1xf32>
    %48 = vector.extract %47[0, 0, 0] : f32 from vector<1x1x1xf32>
    %49 = vector.broadcast %48 : f32 to vector<1x1xf32>
    %50 = tpu.reciprocal %49 {approx = true} : vector<1x1xf32> -> vector<1x1xf32>
    %51 = arith.mulf %49, %50 : vector<1x1xf32>
    %cst_16 = arith.constant 2.000000e+00 : f32
    %52 = vector.broadcast %cst_16 : f32 to vector<1x1xf32>
    %53 = arith.subf %52, %51 : vector<1x1xf32>
    %54 = arith.mulf %50, %53 : vector<1x1xf32>
    %55 = vector.broadcast %54 : vector<1x1xf32> to vector<1x128xf32>
    %56 = arith.mulf %44, %55 : vector<1x128xf32>
    %57 = arith.truncf %56 : vector<1x128xf32> to vector<1x128xbf16>
    %58 = arith.extf %57 : vector<1x128xbf16> to vector<1x128xf32>
    %59 = arith.subf %56, %58 : vector<1x128xf32>
    %60 = arith.truncf %59 : vector<1x128xf32> to vector<1x128xbf16>
    %cst_17 = arith.constant dense<0.000000e+00> : vector<1x128xf32>
    %61 = tpu.matmul %57, %4, %cst_17 {dimension_numbers = #tpu.dot_dimension_numbers<[1], [0], [0], [1], [0, 0, 1, 1], [], []>} : vector<1x128xbf16>, vector<128x128xbf16>, vector<1x128xf32> -> vector<1x128xf32>
    %cst_18 = arith.constant dense<0.000000e+00> : vector<1x128xf32>
    %62 = tpu.matmul %57, %7, %cst_18 {dimension_numbers = #tpu.dot_dimension_numbers<[1], [0], [0], [1], [0, 0, 1, 1], [], []>} : vector<1x128xbf16>, vector<128x128xbf16>, vector<1x128xf32> -> vector<1x128xf32>
    %63 = arith.addf %61, %62 : vector<1x128xf32>
    %cst_19 = arith.constant dense<0.000000e+00> : vector<1x128xf32>
    %64 = tpu.matmul %60, %4, %cst_19 {dimension_numbers = #tpu.dot_dimension_numbers<[1], [0], [0], [1], [0, 0, 1, 1], [], []>} : vector<1x128xbf16>, vector<128x128xbf16>, vector<1x128xf32> -> vector<1x128xf32>
    %65 = arith.addf %63, %64 : vector<1x128xf32>
    %66 = vector.extract_strided_slice %10 {offsets = [2, 0], sizes = [1, 128], strides = [1, 1]} : vector<8x128xf32> to vector<1x128xf32>
    %67 = arith.mulf %65, %66 : vector<1x128xf32>
    %68 = vector.shape_cast %67 : vector<1x128xf32> to vector<1x1x128xf32>
    %cst_20 = arith.constant dense<0.000000e+00> : vector<1xf32>
    %69 = vector.multi_reduction <add>, %68, %cst_20 [1, 2] : vector<1x1x128xf32> to vector<1xf32>
    %70 = vector.shape_cast %69 : vector<1xf32> to vector<1x1x1xf32>
    %71 = vector.extract %70[0, 0, 0] : f32 from vector<1x1x1xf32>
    %72 = vector.broadcast %71 : f32 to vector<1x1xf32>
    %73 = tpu.reciprocal %72 {approx = true} : vector<1x1xf32> -> vector<1x1xf32>
    %74 = arith.mulf %72, %73 : vector<1x1xf32>
    %cst_21 = arith.constant 2.000000e+00 : f32
    %75 = vector.broadcast %cst_21 : f32 to vector<1x1xf32>
    %76 = arith.subf %75, %74 : vector<1x1xf32>
    %77 = arith.mulf %73, %76 : vector<1x1xf32>
    %78 = vector.broadcast %77 : vector<1x1xf32> to vector<1x128xf32>
    %79 = arith.mulf %67, %78 : vector<1x128xf32>
    %80 = arith.truncf %79 : vector<1x128xf32> to vector<1x128xbf16>
    %81 = arith.extf %80 : vector<1x128xbf16> to vector<1x128xf32>
    %82 = arith.subf %79, %81 : vector<1x128xf32>
    %83 = arith.truncf %82 : vector<1x128xf32> to vector<1x128xbf16>
    %cst_22 = arith.constant dense<0.000000e+00> : vector<1x128xf32>
    %84 = tpu.matmul %80, %4, %cst_22 {dimension_numbers = #tpu.dot_dimension_numbers<[1], [0], [0], [1], [0, 0, 1, 1], [], []>} : vector<1x128xbf16>, vector<128x128xbf16>, vector<1x128xf32> -> vector<1x128xf32>
    %cst_23 = arith.constant dense<0.000000e+00> : vector<1x128xf32>
    %85 = tpu.matmul %80, %7, %cst_23 {dimension_numbers = #tpu.dot_dimension_numbers<[1], [0], [0], [1], [0, 0, 1, 1], [], []>} : vector<1x128xbf16>, vector<128x128xbf16>, vector<1x128xf32> -> vector<1x128xf32>
    %86 = arith.addf %84, %85 : vector<1x128xf32>
    %cst_24 = arith.constant dense<0.000000e+00> : vector<1x128xf32>
    %87 = tpu.matmul %83, %4, %cst_24 {dimension_numbers = #tpu.dot_dimension_numbers<[1], [0], [0], [1], [0, 0, 1, 1], [], []>} : vector<1x128xbf16>, vector<128x128xbf16>, vector<1x128xf32> -> vector<1x128xf32>
    %88 = arith.addf %86, %87 : vector<1x128xf32>
    %89 = vector.extract_strided_slice %10 {offsets = [3, 0], sizes = [1, 128], strides = [1, 1]} : vector<8x128xf32> to vector<1x128xf32>
    %90 = arith.mulf %88, %89 : vector<1x128xf32>
    %91 = vector.shape_cast %90 : vector<1x128xf32> to vector<1x1x128xf32>
    %cst_25 = arith.constant dense<0.000000e+00> : vector<1xf32>
    %92 = vector.multi_reduction <add>, %91, %cst_25 [1, 2] : vector<1x1x128xf32> to vector<1xf32>
    %93 = vector.shape_cast %92 : vector<1xf32> to vector<1x1x1xf32>
    %94 = vector.extract %93[0, 0, 0] : f32 from vector<1x1x1xf32>
    %95 = vector.broadcast %94 : f32 to vector<1x1xf32>
    %96 = tpu.reciprocal %95 {approx = true} : vector<1x1xf32> -> vector<1x1xf32>
    %97 = arith.mulf %95, %96 : vector<1x1xf32>
    %cst_26 = arith.constant 2.000000e+00 : f32
    %98 = vector.broadcast %cst_26 : f32 to vector<1x1xf32>
    %99 = arith.subf %98, %97 : vector<1x1xf32>
    %100 = arith.mulf %96, %99 : vector<1x1xf32>
    %101 = vector.broadcast %100 : vector<1x1xf32> to vector<1x128xf32>
    %102 = arith.mulf %90, %101 : vector<1x128xf32>
    %103 = arith.truncf %102 : vector<1x128xf32> to vector<1x128xbf16>
    %104 = arith.extf %103 : vector<1x128xbf16> to vector<1x128xf32>
    %105 = arith.subf %102, %104 : vector<1x128xf32>
    %106 = arith.truncf %105 : vector<1x128xf32> to vector<1x128xbf16>
    %cst_27 = arith.constant dense<0.000000e+00> : vector<1x128xf32>
    %107 = tpu.matmul %103, %4, %cst_27 {dimension_numbers = #tpu.dot_dimension_numbers<[1], [0], [0], [1], [0, 0, 1, 1], [], []>} : vector<1x128xbf16>, vector<128x128xbf16>, vector<1x128xf32> -> vector<1x128xf32>
    %cst_28 = arith.constant dense<0.000000e+00> : vector<1x128xf32>
    %108 = tpu.matmul %103, %7, %cst_28 {dimension_numbers = #tpu.dot_dimension_numbers<[1], [0], [0], [1], [0, 0, 1, 1], [], []>} : vector<1x128xbf16>, vector<128x128xbf16>, vector<1x128xf32> -> vector<1x128xf32>
    %109 = arith.addf %107, %108 : vector<1x128xf32>
    %cst_29 = arith.constant dense<0.000000e+00> : vector<1x128xf32>
    %110 = tpu.matmul %106, %4, %cst_29 {dimension_numbers = #tpu.dot_dimension_numbers<[1], [0], [0], [1], [0, 0, 1, 1], [], []>} : vector<1x128xbf16>, vector<128x128xbf16>, vector<1x128xf32> -> vector<1x128xf32>
    %111 = arith.addf %109, %110 : vector<1x128xf32>
    %112 = vector.extract_strided_slice %10 {offsets = [4, 0], sizes = [1, 128], strides = [1, 1]} : vector<8x128xf32> to vector<1x128xf32>
    %113 = arith.mulf %111, %112 : vector<1x128xf32>
    %114 = vector.shape_cast %113 : vector<1x128xf32> to vector<1x1x128xf32>
    %cst_30 = arith.constant dense<0.000000e+00> : vector<1xf32>
    %115 = vector.multi_reduction <add>, %114, %cst_30 [1, 2] : vector<1x1x128xf32> to vector<1xf32>
    %116 = vector.shape_cast %115 : vector<1xf32> to vector<1x1x1xf32>
    %117 = vector.extract %116[0, 0, 0] : f32 from vector<1x1x1xf32>
    %118 = vector.broadcast %117 : f32 to vector<1x1xf32>
    %119 = tpu.reciprocal %118 {approx = true} : vector<1x1xf32> -> vector<1x1xf32>
    %120 = arith.mulf %118, %119 : vector<1x1xf32>
    %cst_31 = arith.constant 2.000000e+00 : f32
    %121 = vector.broadcast %cst_31 : f32 to vector<1x1xf32>
    %122 = arith.subf %121, %120 : vector<1x1xf32>
    %123 = arith.mulf %119, %122 : vector<1x1xf32>
    %124 = vector.broadcast %123 : vector<1x1xf32> to vector<1x128xf32>
    %125 = arith.mulf %113, %124 : vector<1x128xf32>
    %126 = arith.truncf %125 : vector<1x128xf32> to vector<1x128xbf16>
    %127 = arith.extf %126 : vector<1x128xbf16> to vector<1x128xf32>
    %128 = arith.subf %125, %127 : vector<1x128xf32>
    %129 = arith.truncf %128 : vector<1x128xf32> to vector<1x128xbf16>
    %cst_32 = arith.constant dense<0.000000e+00> : vector<1x128xf32>
    %130 = tpu.matmul %126, %4, %cst_32 {dimension_numbers = #tpu.dot_dimension_numbers<[1], [0], [0], [1], [0, 0, 1, 1], [], []>} : vector<1x128xbf16>, vector<128x128xbf16>, vector<1x128xf32> -> vector<1x128xf32>
    %cst_33 = arith.constant dense<0.000000e+00> : vector<1x128xf32>
    %131 = tpu.matmul %126, %7, %cst_33 {dimension_numbers = #tpu.dot_dimension_numbers<[1], [0], [0], [1], [0, 0, 1, 1], [], []>} : vector<1x128xbf16>, vector<128x128xbf16>, vector<1x128xf32> -> vector<1x128xf32>
    %132 = arith.addf %130, %131 : vector<1x128xf32>
    %cst_34 = arith.constant dense<0.000000e+00> : vector<1x128xf32>
    %133 = tpu.matmul %129, %4, %cst_34 {dimension_numbers = #tpu.dot_dimension_numbers<[1], [0], [0], [1], [0, 0, 1, 1], [], []>} : vector<1x128xbf16>, vector<128x128xbf16>, vector<1x128xf32> -> vector<1x128xf32>
    %134 = arith.addf %132, %133 : vector<1x128xf32>
    %135 = vector.extract_strided_slice %10 {offsets = [5, 0], sizes = [1, 128], strides = [1, 1]} : vector<8x128xf32> to vector<1x128xf32>
    %136 = arith.mulf %134, %135 : vector<1x128xf32>
    %137 = vector.shape_cast %136 : vector<1x128xf32> to vector<1x1x128xf32>
    %cst_35 = arith.constant dense<0.000000e+00> : vector<1xf32>
    %138 = vector.multi_reduction <add>, %137, %cst_35 [1, 2] : vector<1x1x128xf32> to vector<1xf32>
    %139 = vector.shape_cast %138 : vector<1xf32> to vector<1x1x1xf32>
    %140 = vector.extract %139[0, 0, 0] : f32 from vector<1x1x1xf32>
    %141 = vector.broadcast %140 : f32 to vector<1x1xf32>
    %142 = tpu.reciprocal %141 {approx = true} : vector<1x1xf32> -> vector<1x1xf32>
    %143 = arith.mulf %141, %142 : vector<1x1xf32>
    %cst_36 = arith.constant 2.000000e+00 : f32
    %144 = vector.broadcast %cst_36 : f32 to vector<1x1xf32>
    %145 = arith.subf %144, %143 : vector<1x1xf32>
    %146 = arith.mulf %142, %145 : vector<1x1xf32>
    %147 = vector.broadcast %146 : vector<1x1xf32> to vector<1x128xf32>
    %148 = arith.mulf %136, %147 : vector<1x128xf32>
    %149 = arith.truncf %148 : vector<1x128xf32> to vector<1x128xbf16>
    %150 = arith.extf %149 : vector<1x128xbf16> to vector<1x128xf32>
    %151 = arith.subf %148, %150 : vector<1x128xf32>
    %152 = arith.truncf %151 : vector<1x128xf32> to vector<1x128xbf16>
    %cst_37 = arith.constant dense<0.000000e+00> : vector<1x128xf32>
    %153 = tpu.matmul %149, %4, %cst_37 {dimension_numbers = #tpu.dot_dimension_numbers<[1], [0], [0], [1], [0, 0, 1, 1], [], []>} : vector<1x128xbf16>, vector<128x128xbf16>, vector<1x128xf32> -> vector<1x128xf32>
    %cst_38 = arith.constant dense<0.000000e+00> : vector<1x128xf32>
    %154 = tpu.matmul %149, %7, %cst_38 {dimension_numbers = #tpu.dot_dimension_numbers<[1], [0], [0], [1], [0, 0, 1, 1], [], []>} : vector<1x128xbf16>, vector<128x128xbf16>, vector<1x128xf32> -> vector<1x128xf32>
    %155 = arith.addf %153, %154 : vector<1x128xf32>
    %cst_39 = arith.constant dense<0.000000e+00> : vector<1x128xf32>
    %156 = tpu.matmul %152, %4, %cst_39 {dimension_numbers = #tpu.dot_dimension_numbers<[1], [0], [0], [1], [0, 0, 1, 1], [], []>} : vector<1x128xbf16>, vector<128x128xbf16>, vector<1x128xf32> -> vector<1x128xf32>
    %157 = arith.addf %155, %156 : vector<1x128xf32>
    %158 = vector.extract_strided_slice %10 {offsets = [6, 0], sizes = [1, 128], strides = [1, 1]} : vector<8x128xf32> to vector<1x128xf32>
    %159 = arith.mulf %157, %158 : vector<1x128xf32>
    %160 = vector.shape_cast %159 : vector<1x128xf32> to vector<1x1x128xf32>
    %cst_40 = arith.constant dense<0.000000e+00> : vector<1xf32>
    %161 = vector.multi_reduction <add>, %160, %cst_40 [1, 2] : vector<1x1x128xf32> to vector<1xf32>
    %162 = vector.shape_cast %161 : vector<1xf32> to vector<1x1x1xf32>
    %163 = vector.extract %162[0, 0, 0] : f32 from vector<1x1x1xf32>
    %164 = vector.broadcast %163 : f32 to vector<1x1xf32>
    %165 = tpu.reciprocal %164 {approx = true} : vector<1x1xf32> -> vector<1x1xf32>
    %166 = arith.mulf %164, %165 : vector<1x1xf32>
    %cst_41 = arith.constant 2.000000e+00 : f32
    %167 = vector.broadcast %cst_41 : f32 to vector<1x1xf32>
    %168 = arith.subf %167, %166 : vector<1x1xf32>
    %169 = arith.mulf %165, %168 : vector<1x1xf32>
    %170 = vector.broadcast %169 : vector<1x1xf32> to vector<1x128xf32>
    %171 = arith.mulf %159, %170 : vector<1x128xf32>
    %172 = arith.truncf %171 : vector<1x128xf32> to vector<1x128xbf16>
    %173 = arith.extf %172 : vector<1x128xbf16> to vector<1x128xf32>
    %174 = arith.subf %171, %173 : vector<1x128xf32>
    %175 = arith.truncf %174 : vector<1x128xf32> to vector<1x128xbf16>
    %cst_42 = arith.constant dense<0.000000e+00> : vector<1x128xf32>
    %176 = tpu.matmul %172, %4, %cst_42 {dimension_numbers = #tpu.dot_dimension_numbers<[1], [0], [0], [1], [0, 0, 1, 1], [], []>} : vector<1x128xbf16>, vector<128x128xbf16>, vector<1x128xf32> -> vector<1x128xf32>
    %cst_43 = arith.constant dense<0.000000e+00> : vector<1x128xf32>
    %177 = tpu.matmul %172, %7, %cst_43 {dimension_numbers = #tpu.dot_dimension_numbers<[1], [0], [0], [1], [0, 0, 1, 1], [], []>} : vector<1x128xbf16>, vector<128x128xbf16>, vector<1x128xf32> -> vector<1x128xf32>
    %178 = arith.addf %176, %177 : vector<1x128xf32>
    %cst_44 = arith.constant dense<0.000000e+00> : vector<1x128xf32>
    %179 = tpu.matmul %175, %4, %cst_44 {dimension_numbers = #tpu.dot_dimension_numbers<[1], [0], [0], [1], [0, 0, 1, 1], [], []>} : vector<1x128xbf16>, vector<128x128xbf16>, vector<1x128xf32> -> vector<1x128xf32>
    %180 = arith.addf %178, %179 : vector<1x128xf32>
    %181 = vector.extract_strided_slice %10 {offsets = [7, 0], sizes = [1, 128], strides = [1, 1]} : vector<8x128xf32> to vector<1x128xf32>
    %182 = arith.mulf %180, %181 : vector<1x128xf32>
    %183 = vector.shape_cast %182 : vector<1x128xf32> to vector<1x1x128xf32>
    %cst_45 = arith.constant dense<0.000000e+00> : vector<1xf32>
    %184 = vector.multi_reduction <add>, %183, %cst_45 [1, 2] : vector<1x1x128xf32> to vector<1xf32>
    %185 = vector.shape_cast %184 : vector<1xf32> to vector<1x1x1xf32>
    %186 = vector.extract %185[0, 0, 0] : f32 from vector<1x1x1xf32>
    %187 = vector.broadcast %186 : f32 to vector<1x1xf32>
    %188 = tpu.reciprocal %187 {approx = true} : vector<1x1xf32> -> vector<1x1xf32>
    %189 = arith.mulf %187, %188 : vector<1x1xf32>
    %cst_46 = arith.constant 2.000000e+00 : f32
    %190 = vector.broadcast %cst_46 : f32 to vector<1x1xf32>
    %191 = arith.subf %190, %189 : vector<1x1xf32>
    %192 = arith.mulf %188, %191 : vector<1x1xf32>
    %193 = vector.broadcast %192 : vector<1x1xf32> to vector<1x128xf32>
    %194 = arith.mulf %182, %193 : vector<1x128xf32>
    %195 = tpu.concatenate %33, %56, %79, %102, %125, %148, %171, %194 in 0 : vector<1x128xf32>, vector<1x128xf32>, vector<1x128xf32>, vector<1x128xf32>, vector<1x128xf32>, vector<1x128xf32>, vector<1x128xf32>, vector<1x128xf32> -> vector<8x128xf32>
    %c0_47 = arith.constant 0 : index
    %c0_48 = arith.constant 0 : index
    %196 = vector.load %arg5[%c0_47, %c0_48] : memref<8x128xf32, #tpu.memory_space<vmem>>, vector<8x128xf32>
    tpu.vector_store %arg5[%c0_47, %c0_48], %195 {strides = array<i32>} : memref<8x128xf32, #tpu.memory_space<vmem>>, vector<8x128xf32>,
    %c0_49 = arith.constant 0 : index
    %c0_50 = arith.constant 0 : index
    %197 = vector.load %arg7[%c0_49, %c0_50] : memref<1x128xf32, #tpu.memory_space<vmem>>, vector<1x128xf32>
    tpu.vector_store %arg7[%c0_49, %c0_50], %194 {strides = array<i32>} : memref<1x128xf32, #tpu.memory_space<vmem>>, vector<1x128xf32>,
    %c0_51 = arith.constant 0 : index
    %c0_52 = arith.constant 0 : index
    %198 = vector.load %arg5[%c0_51, %c0_52] : memref<8x128xf32, #tpu.memory_space<vmem>>, vector<8x128xf32>
    %cst_53 = arith.constant dense<0.000000e+00> : vector<1x8xf32>
    %199 = tpu.matmul %8, %198, %cst_53 {dimension_numbers = #tpu.dot_dimension_numbers<[1], [1], [0], [0], [0, 0, 1, 0], [], []>, precision = #tpu.contract_precision<fp32>} : vector<1x128xf32>, vector<8x128xf32>, vector<1x8xf32> -> vector<1x8xf32>
    %cst_54 = arith.constant 1.000000e-10 : f32
    %200 = vector.broadcast %cst_54 : f32 to vector<8x128xf32>
    %201 = arith.addf %198, %200 : vector<8x128xf32>
    %202 = math.log %201 : vector<8x128xf32>
    %203 = arith.mulf %198, %202 : vector<8x128xf32>
    %cst_55 = arith.constant 1.000000e+00 : f32
    %204 = vector.broadcast %cst_55 : f32 to vector<1x128xf32>
    %cst_56 = arith.constant dense<0.000000e+00> : vector<1x8xf32>
    %205 = tpu.matmul %204, %203, %cst_56 {dimension_numbers = #tpu.dot_dimension_numbers<[1], [1], [0], [0], [0, 0, 1, 0], [], []>, precision = #tpu.contract_precision<fp32>} : vector<1x128xf32>, vector<8x128xf32>, vector<1x8xf32> -> vector<1x8xf32>
    %cst_57 = arith.constant 0.000000e+00 : f32
    %206 = vector.broadcast %cst_57 : f32 to vector<1x8xf32>
    %207 = arith.subf %206, %205 : vector<1x8xf32>
    %cst_58 = arith.constant 0.000000e+00 : f32
    %208 = vector.broadcast %cst_58 : f32 to vector<6x8xf32>
    %209 = tpu.concatenate %199, %207, %208 in 0 : vector<1x8xf32>, vector<1x8xf32>, vector<6x8xf32> -> vector<8x8xf32>
    %c0_59 = arith.constant 0 : index
    %c0_60 = arith.constant 0 : index
    %210 = vector.load %arg6[%c0_59, %c0_60] : memref<8x8xf32, #tpu.memory_space<vmem>>, vector<8x8xf32>
    tpu.vector_store %arg6[%c0_59, %c0_60], %209 {strides = array<i32>} : memref<8x8xf32, #tpu.memory_space<vmem>>, vector<8x8xf32>,
    return
  }
  func.func @transform_0(%arg0: i32) -> (i32, i32) {
    %c0_i32 = arith.constant 0 : i32
    %c0_i32_0 = arith.constant 0 : i32
    %c0_i32_1 = arith.constant 0 : i32
    return %c0_i32, %c0_i32_0 : i32, i32
  }
  func.func @transform_1(%arg0: i32) -> (i32, i32) {
    %c0_i32 = arith.constant 0 : i32
    %c0_i32_0 = arith.constant 0 : i32
    return %arg0, %c0_i32 : i32, i32
  }
  func.func @transform_2(%arg0: i32) -> (i32, i32) {
    %c0_i32 = arith.constant 0 : i32
    %c0_i32_0 = arith.constant 0 : i32
    %c0_i32_1 = arith.constant 0 : i32
    return %c0_i32, %c0_i32_0 : i32, i32
  }
  func.func @transform_3(%arg0: i32) -> (i32, i32) {
    %c0_i32 = arith.constant 0 : i32
    %c0_i32_0 = arith.constant 0 : i32
    %c0_i32_1 = arith.constant 0 : i32
    return %c0_i32, %c0_i32_0 : i32, i32
  }
  func.func @transform_4(%arg0: i32) -> (i32, i32) {
    %c0_i32 = arith.constant 0 : i32
    %c0_i32_0 = arith.constant 0 : i32
    return %arg0, %c0_i32 : i32, i32
  }
  func.func @transform_5(%arg0: i32) -> (i32, i32) {
    %c0_i32 = arith.constant 0 : i32
    %c0_i32_0 = arith.constant 0 : i32
    return %arg0, %c0_i32 : i32, i32
  }
}

</mosaic_0001>

<llo_original>
// kernel: tpu_custom_call.1
$region0: #{tpu_custom_call.1}
  #allocation0 [shape = 'u32[]', space=smem, size = 0x4, offset = 0x4, fixed_abs, tag = 'smem constant byte address 0x4 - core index']
  #allocation1 [shape = 'u32[72,128]{1,0:T(1,128)}', space=vmem, size = 0x9000, scoped, tag = 'internal scratch']
  #allocation2 [shape = 'f32[1,128]{1,0:T(1,128)}', space=vmem, size = 0x200, scoped, tag = 'scratch operand']
  %s0 = inlined_call_operand.hbm [shape: f32[128,128], index: 0, kind: input, shape index: {}]
  %s1 = inlined_call_operand.hbm [shape: f32[8,128], index: 1, kind: input, shape index: {}]
  %s2 = inlined_call_operand.vmem [shape: f32[1,128], index: 2, kind: input, shape index: {}]
  %s3 = inlined_call_operand.vmem [shape: f32[1,128], index: 3, kind: input, shape index: {}]
  %s4 = inlined_call_operand.hbm [shape: f32[8,128], index: 4, kind: output, shape index: {0}]
  %s5 = inlined_call_operand.hbm [shape: f32[8,8], index: 5, kind: output, shape index: {1}]
  %6 = xla_tuple %s4, %s5
  %s7 = sld [smem:[#allocation0]]
  $region46: #{tpu_custom_call.1} parent=0
    _
  %s9 = ssub.s32 1, %s7
  %s10 = scalar_select 0, %s9, %s7
  $region1: #{tpu_custom_call.1} parent=0
    #allocation3 [shape = 'u8[65536]{0}', space=vmem, size = 0x10000, scoped, tag = 'input window, operand 0, single buffered']
    #allocation4 [shape = 's32[1]{0}', space=sflag, size = 0x4, scoped, tag = 'scoped memory for tpu_custom_call.1']
    #allocation5 [shape = 's32[1]{0}', space=sflag, size = 0x4, scoped, tag = 'scoped memory for tpu_custom_call.1']
    #allocation6 [shape = 'u8[4096]{0}', space=vmem, size = 0x1000, scoped, tag = 'input window, operand 1, single buffered']
    #allocation7 [shape = 's32[1]{0}', space=sflag, size = 0x4, scoped, tag = 'scoped memory for tpu_custom_call.1']
    #allocation8 [shape = 'u8[4096]{0}', space=vmem, size = 0x1000, scoped, tag = 'output window, operand 0, single buffered']
    #allocation9 [shape = 'u8[4096]{0}', space=vmem, size = 0x1000, scoped, tag = 'output window, operand 1, single buffered']
    #allocation10 [shape = 's32[1]{0}', space=sflag, size = 0x4, scoped, tag = 'scoped memory for tpu_custom_call.1']
    %11 = vsyncpa [#allocation4], 0
    %12 = vsyncpa [#allocation7], 0
    %13 = vsyncpa [#allocation5], 0
    %14 = vsyncpa [#allocation10], 0
    // Predicated region
    $region2: #{tpu_custom_call.1} parent=1 // pred_check
      _
    $region3: #{tpu_custom_call.1} parent=1 // pred_check_branch
      %16 = sbr.rel (0) target = $region5
    $region4: #{tpu_custom_call.1} parent=1 // pred_region
      %18 = vsyncadd [#allocation4], 0
      %s19 = sshll.u32 %s0, 4
      %s20 = int_to_ptr.hbm [resolvable:$true] %s19
      %s21 = sshll.u32 [#allocation3], 4
      %s22 = int_to_ptr.vmem [resolvable:$true] %s21
      %27 = dma.hbm_to_vmem [thread:$0]  %s20, 2048, %s22, [#allocation4], 128, 128, 8
    $region5: #{tpu_custom_call.1} parent=1 // pred_fallthru
      _
    // Predicated region
    $region6: #{tpu_custom_call.1} parent=1 // pred_check
      _
    $region7: #{tpu_custom_call.1} parent=1 // pred_check_branch
      %29 = sbr.rel (0) target = $region9
    $region8: #{tpu_custom_call.1} parent=1 // pred_region
      %31 = vsyncadd [#allocation7], 0
      %s33 = sshll.u32 %s1, 4
      %s34 = int_to_ptr.hbm [resolvable:$true] %s33
      %s35 = sshll.u32 [#allocation6], 4
      %s36 = int_to_ptr.vmem [resolvable:$true] %s35
      %38 = dma.hbm_to_vmem [thread:$0]  %s34, 128, %s36, [#allocation7]
    $region9: #{tpu_custom_call.1} parent=1 // pred_fallthru
      _
    // Predicated region
    $region10: #{tpu_custom_call.1} parent=1 // pred_check
      _
    $region11: #{tpu_custom_call.1} parent=1 // pred_check_branch
      %40 = sbr.rel (0) target = $region13
    $region12: #{tpu_custom_call.1} parent=1 // pred_region
      _
    $region13: #{tpu_custom_call.1} parent=1 // pred_fallthru
      _
    // Predicated region
    $region14: #{tpu_custom_call.1} parent=1 // pred_check
      _
    $region15: #{tpu_custom_call.1} parent=1 // pred_check_branch
      %42 = sbr.rel (0) target = $region17
    $region16: #{tpu_custom_call.1} parent=1 // pred_region
      _
    $region17: #{tpu_custom_call.1} parent=1 // pred_fallthru
      _
    // Predicated region
    $region18: #{tpu_custom_call.1} parent=1 // pred_check
      _
    $region19: #{tpu_custom_call.1} parent=1 // pred_check_branch
      %44 = sbr.rel (0) target = $region21
    $region20: #{tpu_custom_call.1} parent=1 // pred_region
      %46 = dma.done [#allocation4], 2048
    $region21: #{tpu_custom_call.1} parent=1 // pred_fallthru
      _
    // Predicated region
    $region22: #{tpu_custom_call.1} parent=1 // pred_check
      _
    $region23: #{tpu_custom_call.1} parent=1 // pred_check_branch
      %48 = sbr.rel (0) target = $region25
    $region24: #{tpu_custom_call.1} parent=1 // pred_region
      %50 = dma.done [#allocation7], 128
    $region25: #{tpu_custom_call.1} parent=1 // pred_fallthru
      _
    %p51 = scmp.eq.s32.totalorder 0, 0
    // Predicated region
    $region26: #{tpu_custom_call.1} parent=1 // pred_check
      %p52 = pneg %p51
    $region27: #{tpu_custom_call.1} parent=1 // pred_check_branch
      %54 = sbr.rel (%p52) target = $region29
    $region28: #{tpu_custom_call.1} parent=1 // pred_region
      %v55 = vld [vmem:[%s3] sm:$0x1]
      %56 = vst [vmem:[#allocation2] sm:$0x1] %v55
    $region29: #{tpu_custom_call.1} parent=1 // pred_fallthru
      _
    %v57 = vld [vmem:[#allocation3] sm:$0xff]
    %v58 = vld [vmem:[#allocation3 + $0x8] sm:$0xff]
    %v59 = vld [vmem:[#allocation3 + $0x10] sm:$0xff]
    %v60 = vld [vmem:[#allocation3 + $0x18] sm:$0xff]
    %v61 = vld [vmem:[#allocation3 + $0x20] sm:$0xff]
    %v62 = vld [vmem:[#allocation3 + $0x28] sm:$0xff]
    %v63 = vld [vmem:[#allocation3 + $0x30] sm:$0xff]
    %v64 = vld [vmem:[#allocation3 + $0x38] sm:$0xff]
    %v65 = vld [vmem:[#allocation3 + $0x40] sm:$0xff]
    %v66 = vld [vmem:[#allocation3 + $0x48] sm:$0xff]
    %v67 = vld [vmem:[#allocation3 + $0x50] sm:$0xff]
    %v68 = vld [vmem:[#allocation3 + $0x58] sm:$0xff]
    %v69 = vld [vmem:[#allocation3 + $0x60] sm:$0xff]
    %v70 = vld [vmem:[#allocation3 + $0x68] sm:$0xff]
    %v71 = vld [vmem:[#allocation3 + $0x70] sm:$0xff]
    %v72 = vld [vmem:[#allocation3 + $0x78] sm:$0xff]
    %v73 = vpack.c.bf16 %v57, %v57
    %v74 = vpack.c.bf16 %v58, %v58
    %v75 = vpack.c.bf16 %v59, %v59
    %v76 = vpack.c.bf16 %v60, %v60
    %v77 = vpack.c.bf16 %v61, %v61
    %v78 = vpack.c.bf16 %v62, %v62
    %v79 = vpack.c.bf16 %v63, %v63
    %v80 = vpack.c.bf16 %v64, %v64
    %v81 = vpack.c.bf16 %v65, %v65
    %v82 = vpack.c.bf16 %v66, %v66
    %v83 = vpack.c.bf16 %v67, %v67
    %v84 = vpack.c.bf16 %v68, %v68
    %v85 = vpack.c.bf16 %v69, %v69
    %v86 = vpack.c.bf16 %v70, %v70
    %v87 = vpack.c.bf16 %v71, %v71
    %v88 = vpack.c.bf16 %v72, %v72
    %v89 = vunpack.c.l.bf16 %v73
    %v90 = vunpack.c.l.bf16 %v74
    %v91 = vunpack.c.l.bf16 %v75
    %v92 = vunpack.c.l.bf16 %v76
    %v93 = vunpack.c.l.bf16 %v77
    %v94 = vunpack.c.l.bf16 %v78
    %v95 = vunpack.c.l.bf16 %v79
    %v96 = vunpack.c.l.bf16 %v80
    %v97 = vunpack.c.l.bf16 %v81
    %v98 = vunpack.c.l.bf16 %v82
    %v99 = vunpack.c.l.bf16 %v83
    %v100 = vunpack.c.l.bf16 %v84
    %v101 = vunpack.c.l.bf16 %v85
    %v102 = vunpack.c.l.bf16 %v86
    %v103 = vunpack.c.l.bf16 %v87
    %v104 = vunpack.c.l.bf16 %v88
    %v105 = vsub.f32 %v57, %v89
    %v106 = vsub.f32 %v58, %v90
    %v107 = vsub.f32 %v59, %v91
    %v108 = vsub.f32 %v60, %v92
    %v109 = vsub.f32 %v61, %v93
    %v110 = vsub.f32 %v62, %v94
    %v111 = vsub.f32 %v63, %v95
    %v112 = vsub.f32 %v64, %v96
    %v113 = vsub.f32 %v65, %v97
    %v114 = vsub.f32 %v66, %v98
    %v115 = vsub.f32 %v67, %v99
    %v116 = vsub.f32 %v68, %v100
    %v117 = vsub.f32 %v69, %v101
    %v118 = vsub.f32 %v70, %v102
    %v119 = vsub.f32 %v71, %v103
    %v120 = vsub.f32 %v72, %v104
    %v121 = vpack.c.bf16 %v106, %v105
    %v122 = vpack.c.bf16 %v108, %v107
    %v123 = vpack.c.bf16 %v110, %v109
    %v124 = vpack.c.bf16 %v112, %v111
    %v125 = vpack.c.bf16 %v114, %v113
    %v126 = vpack.c.bf16 %v116, %v115
    %v127 = vpack.c.bf16 %v118, %v117
    %v128 = vpack.c.bf16 %v120, %v119
    %v129 = vld [vmem:[%s2] sm:$0x1]
    %v130 = vld [vmem:[#allocation2] sm:$0x1]
    %v131 = vld [vmem:[#allocation6] sm:$0xff]
    %v132 = vpack.c.bf16 %v130, %v130
    %v133 = vunpack.c.l.bf16 %v132
    %v134 = vsub.f32 %v130, %v133
    %v135 = vpack.c.bf16 %v134, %v134
    %136 = vmatpush.bf16.msra.mxu0 %v128
    %137 = vmatpush.bf16.msra.mxu0 %v127
    %138 = vmatpush.bf16.msra.mxu0 %v126
    %139 = vmatpush.bf16.msra.mxu0 %v125
    %140 = vmatpush.bf16.msra.mxu0 %v124
    %141 = vmatpush.bf16.msra.mxu0 %v123
    %142 = vmatpush.bf16.msra.mxu0 %v122
    %143 = vmatpush.bf16.msra.mxu0 %v121
    %144 = vmatmul.bf16.gmra.mxu0 %v132
    %v145 = vpop.f32.mrf.mxu0
    %v146 = vadd.f32 0.0, %v145
    %v147 = vpop.f32.mrf.mxu0
    %148 = vdwg.mxu0
    %v165 = vunpack.c.l.b16 %v73
    %v166 = vunpack.c.l.b16 %v74
    %v167 = vunpack.c.l.b16 %v75
    %v168 = vunpack.c.l.b16 %v76
    %v169 = vunpack.c.l.b16 %v77
    %v170 = vunpack.c.l.b16 %v78
    %v171 = vunpack.c.l.b16 %v79
    %v172 = vunpack.c.l.b16 %v80
    %v173 = vunpack.c.l.b16 %v81
    %v174 = vunpack.c.l.b16 %v82
    %v175 = vunpack.c.l.b16 %v83
    %v176 = vunpack.c.l.b16 %v84
    %v177 = vunpack.c.l.b16 %v85
    %v178 = vunpack.c.l.b16 %v86
    %v179 = vunpack.c.l.b16 %v87
    %v180 = vunpack.c.l.b16 %v88
    %v181 = vpack.c.b16 %v166, %v165
    %v182 = vpack.c.b16 %v168, %v167
    %v183 = vpack.c.b16 %v170, %v169
    %v184 = vpack.c.b16 %v172, %v171
    %v185 = vpack.c.b16 %v174, %v173
    %v186 = vpack.c.b16 %v176, %v175
    %v187 = vpack.c.b16 %v178, %v177
    %v188 = vpack.c.b16 %v180, %v179
    %197 = vmatpush.bf16.msra.mxu0 %v188
    %198 = vmatpush.bf16.msra.mxu0 %v187
    %199 = vmatpush.bf16.msra.mxu0 %v186
    %200 = vmatpush.bf16.msra.mxu0 %v185
    %201 = vmatpush.bf16.msra.mxu0 %v184
    %202 = vmatpush.bf16.msra.mxu0 %v183
    %203 = vmatpush.bf16.msra.mxu0 %v182
    %204 = vmatpush.bf16.msra.mxu0 %v181
    %205 = vmatmul.bf16.gmra.mxu0 %v132
    %v206 = vpop.f32.mrf.mxu0
    %v207 = vadd.f32 %v146, %v206
    %v208 = vpop.f32.mrf.mxu0
    %209 = vdwg.mxu0
    %210 = vmatpush.bf16.msra.mxu0 %v188
    %211 = vmatpush.bf16.msra.mxu0 %v187
    %212 = vmatpush.bf16.msra.mxu0 %v186
    %213 = vmatpush.bf16.msra.mxu0 %v185
    %214 = vmatpush.bf16.msra.mxu0 %v184
    %215 = vmatpush.bf16.msra.mxu0 %v183
    %216 = vmatpush.bf16.msra.mxu0 %v182
    %217 = vmatpush.bf16.msra.mxu0 %v181
    %218 = vmatmul.bf16.gmra.mxu0 %v135
    %v219 = vpop.f32.mrf.mxu0
    %v220 = vadd.f32 0.0, %v219
    %v221 = vpop.f32.mrf.mxu0
    %222 = vdwg.mxu0
    %v223 = vadd.f32 %v207, %v220
    %v224 = vmul.f32 %v223, %v131
    %vm225 = vcmask 1040384
    %v226 = vsel %vm225, %v224, 0.0
    %227 = vadd.xlane.f32.xlu0 %v226
    %v228 = vpop.xlane.xlu0 %227
    %v229 = vrot.slane %v228, 4
    %v230 = vadd.f32 %v228, %v229
    %v231 = vrot.slane %v230, 2
    %v232 = vadd.f32 %v230, %v231
    %v233 = vrot.slane %v232, 1
    %v234 = vadd.f32 %v232, %v233
    %s235 = vtos %v234
    %v236 = vstv %s235
    %v237 = vrcp.pop %v236
    %v238 = vmul.f32 %v236, %v237
    %v239 = vsub.f32 2.0, %v238
    %v240 = vmul.f32 %v237, %v239
    %v241 = vmul.f32 %v224, %v240
    %v242 = vpack.c.bf16 %v241, %v241
    %v243 = vunpack.c.l.bf16 %v242
    %v244 = vsub.f32 %v241, %v243
    %v245 = vpack.c.bf16 %v244, %v244
    %246 = vmatpush.bf16.msra.mxu0 %v128
    %247 = vmatpush.bf16.msra.mxu0 %v127
    %248 = vmatpush.bf16.msra.mxu0 %v126
    %249 = vmatpush.bf16.msra.mxu0 %v125
    %250 = vmatpush.bf16.msra.mxu0 %v124
    %251 = vmatpush.bf16.msra.mxu0 %v123
    %252 = vmatpush.bf16.msra.mxu0 %v122
    %253 = vmatpush.bf16.msra.mxu0 %v121
    %254 = vmatmul.bf16.gmra.mxu0 %v242
    %v255 = vpop.f32.mrf.mxu0
    %v256 = vadd.f32 0.0, %v255
    %v257 = vpop.f32.mrf.mxu0
    %258 = vdwg.mxu0
    %259 = vmatpush.bf16.msra.mxu0 %v188
    %260 = vmatpush.bf16.msra.mxu0 %v187
    %261 = vmatpush.bf16.msra.mxu0 %v186
    %262 = vmatpush.bf16.msra.mxu0 %v185
    %263 = vmatpush.bf16.msra.mxu0 %v184
    %264 = vmatpush.bf16.msra.mxu0 %v183
    %265 = vmatpush.bf16.msra.mxu0 %v182
    %266 = vmatpush.bf16.msra.mxu0 %v181
    %267 = vmatmul.bf16.gmra.mxu0 %v242
    %v268 = vpop.f32.mrf.mxu0
    %v269 = vadd.f32 %v256, %v268
    %v270 = vpop.f32.mrf.mxu0
    %271 = vdwg.mxu0
    %272 = vmatpush.bf16.msra.mxu0 %v188
    %273 = vmatpush.bf16.msra.mxu0 %v187
    %274 = vmatpush.bf16.msra.mxu0 %v186
    %275 = vmatpush.bf16.msra.mxu0 %v185
    %276 = vmatpush.bf16.msra.mxu0 %v184
    %277 = vmatpush.bf16.msra.mxu0 %v183
    %278 = vmatpush.bf16.msra.mxu0 %v182
    %279 = vmatpush.bf16.msra.mxu0 %v181
    %280 = vmatmul.bf16.gmra.mxu0 %v245
    %v281 = vpop.f32.mrf.mxu0
    %v282 = vadd.f32 0.0, %v281
    %v283 = vpop.f32.mrf.mxu0
    %284 = vdwg.mxu0
    %v285 = vadd.f32 %v269, %v282
    %v287 = vrot.slane %v131, 1
    %v289 = vmul.f32 %v285, %v287
    %v290 = vsel %vm225, %v289, 0.0
    %291 = vadd.xlane.f32.xlu0 %v290
    %v292 = vpop.xlane.xlu0 %291
    %v293 = vrot.slane %v292, 4
    %v294 = vadd.f32 %v292, %v293
    %v295 = vrot.slane %v294, 2
    %v296 = vadd.f32 %v294, %v295
    %v297 = vrot.slane %v296, 1
    %v298 = vadd.f32 %v296, %v297
    %s299 = vtos %v298
    %v300 = vstv %s299
    %v301 = vrcp.pop %v300
    %v302 = vmul.f32 %v300, %v301
    %v303 = vsub.f32 2.0, %v302
    %v304 = vmul.f32 %v301, %v303
    %v305 = vmul.f32 %v289, %v304
    %v306 = vpack.c.bf16 %v305, %v305
    %v307 = vunpack.c.l.bf16 %v306
    %v308 = vsub.f32 %v305, %v307
    %v309 = vpack.c.bf16 %v308, %v308
    %310 = vmatpush.bf16.msra.mxu0 %v128
    %311 = vmatpush.bf16.msra.mxu0 %v127
    %312 = vmatpush.bf16.msra.mxu0 %v126
    %313 = vmatpush.bf16.msra.mxu0 %v125
    %314 = vmatpush.bf16.msra.mxu0 %v124
    %315 = vmatpush.bf16.msra.mxu0 %v123
    %316 = vmatpush.bf16.msra.mxu0 %v122
    %317 = vmatpush.bf16.msra.mxu0 %v121
    %318 = vmatmul.bf16.gmra.mxu0 %v306
    %v319 = vpop.f32.mrf.mxu0
    %v320 = vadd.f32 0.0, %v319
    %v321 = vpop.f32.mrf.mxu0
    %322 = vdwg.mxu0
    %323 = vmatpush.bf16.msra.mxu0 %v188
    %324 = vmatpush.bf16.msra.mxu0 %v187
    %325 = vmatpush.bf16.msra.mxu0 %v186
    %326 = vmatpush.bf16.msra.mxu0 %v185
    %327 = vmatpush.bf16.msra.mxu0 %v184
    %328 = vmatpush.bf16.msra.mxu0 %v183
    %329 = vmatpush.bf16.msra.mxu0 %v182
    %330 = vmatpush.bf16.msra.mxu0 %v181
    %331 = vmatmul.bf16.gmra.mxu0 %v306
    %v332 = vpop.f32.mrf.mxu0
    %v333 = vadd.f32 %v320, %v332
    %v334 = vpop.f32.mrf.mxu0
    %335 = vdwg.mxu0
    %336 = vmatpush.bf16.msra.mxu0 %v188
    %337 = vmatpush.bf16.msra.mxu0 %v187
    %338 = vmatpush.bf16.msra.mxu0 %v186
    %339 = vmatpush.bf16.msra.mxu0 %v185
    %340 = vmatpush.bf16.msra.mxu0 %v184
    %341 = vmatpush.bf16.msra.mxu0 %v183
    %342 = vmatpush.bf16.msra.mxu0 %v182
    %343 = vmatpush.bf16.msra.mxu0 %v181
    %344 = vmatmul.bf16.gmra.mxu0 %v309
    %v345 = vpop.f32.mrf.mxu0
    %v346 = vadd.f32 0.0, %v345
    %v347 = vpop.f32.mrf.mxu0
    %348 = vdwg.mxu0
    %v349 = vadd.f32 %v333, %v346
    %v350 = vrot.slane %v131, 2
    %v352 = vmul.f32 %v349, %v350
    %v353 = vsel %vm225, %v352, 0.0
    %354 = vadd.xlane.f32.xlu0 %v353
    %v355 = vpop.xlane.xlu0 %354
    %v356 = vrot.slane %v355, 4
    %v357 = vadd.f32 %v355, %v356
    %v358 = vrot.slane %v357, 2
    %v359 = vadd.f32 %v357, %v358
    %v360 = vrot.slane %v359, 1
    %v361 = vadd.f32 %v359, %v360
    %s362 = vtos %v361
    %v363 = vstv %s362
    %v364 = vrcp.pop %v363
    %v365 = vmul.f32 %v363, %v364
    %v366 = vsub.f32 2.0, %v365
    %v367 = vmul.f32 %v364, %v366
    %v368 = vmul.f32 %v352, %v367
    %v369 = vpack.c.bf16 %v368, %v368
    %v370 = vunpack.c.l.bf16 %v369
    %v371 = vsub.f32 %v368, %v370
    %v372 = vpack.c.bf16 %v371, %v371
    %373 = vmatpush.bf16.msra.mxu0 %v128
    %374 = vmatpush.bf16.msra.mxu0 %v127
    %375 = vmatpush.bf16.msra.mxu0 %v126
    %376 = vmatpush.bf16.msra.mxu0 %v125
    %377 = vmatpush.bf16.msra.mxu0 %v124
    %378 = vmatpush.bf16.msra.mxu0 %v123
    %379 = vmatpush.bf16.msra.mxu0 %v122
    %380 = vmatpush.bf16.msra.mxu0 %v121
    %381 = vmatmul.bf16.gmra.mxu0 %v369
    %v382 = vpop.f32.mrf.mxu0
    %v383 = vadd.f32 0.0, %v382
    %v384 = vpop.f32.mrf.mxu0
    %385 = vdwg.mxu0
    %386 = vmatpush.bf16.msra.mxu0 %v188
    %387 = vmatpush.bf16.msra.mxu0 %v187
    %388 = vmatpush.bf16.msra.mxu0 %v186
    %389 = vmatpush.bf16.msra.mxu0 %v185
    %390 = vmatpush.bf16.msra.mxu0 %v184
    %391 = vmatpush.bf16.msra.mxu0 %v183
    %392 = vmatpush.bf16.msra.mxu0 %v182
    %393 = vmatpush.bf16.msra.mxu0 %v181
    %394 = vmatmul.bf16.gmra.mxu0 %v369
    %v395 = vpop.f32.mrf.mxu0
    %v396 = vadd.f32 %v383, %v395
    %v397 = vpop.f32.mrf.mxu0
    %398 = vdwg.mxu0
    %399 = vmatpush.bf16.msra.mxu0 %v188
    %400 = vmatpush.bf16.msra.mxu0 %v187
    %401 = vmatpush.bf16.msra.mxu0 %v186
    %402 = vmatpush.bf16.msra.mxu0 %v185
    %403 = vmatpush.bf16.msra.mxu0 %v184
    %404 = vmatpush.bf16.msra.mxu0 %v183
    %405 = vmatpush.bf16.msra.mxu0 %v182
    %406 = vmatpush.bf16.msra.mxu0 %v181
    %407 = vmatmul.bf16.gmra.mxu0 %v372
    %v408 = vpop.f32.mrf.mxu0
    %v409 = vadd.f32 0.0, %v408
    %v410 = vpop.f32.mrf.mxu0
    %411 = vdwg.mxu0
    %v412 = vadd.f32 %v396, %v409
    %v413 = vrot.slane %v131, 3
    %v415 = vmul.f32 %v412, %v413
    %v416 = vsel %vm225, %v415, 0.0
    %417 = vadd.xlane.f32.xlu0 %v416
    %v418 = vpop.xlane.xlu0 %417
    %v419 = vrot.slane %v418, 4
    %v420 = vadd.f32 %v418, %v419
    %v421 = vrot.slane %v420, 2
    %v422 = vadd.f32 %v420, %v421
    %v423 = vrot.slane %v422, 1
    %v424 = vadd.f32 %v422, %v423
    %s425 = vtos %v424
    %v426 = vstv %s425
    %v427 = vrcp.pop %v426
    %v428 = vmul.f32 %v426, %v427
    %v429 = vsub.f32 2.0, %v428
    %v430 = vmul.f32 %v427, %v429
    %v431 = vmul.f32 %v415, %v430
    %v432 = vpack.c.bf16 %v431, %v431
    %v433 = vunpack.c.l.bf16 %v432
    %v434 = vsub.f32 %v431, %v433
    %v435 = vpack.c.bf16 %v434, %v434
    %436 = vmatpush.bf16.msra.mxu0 %v128
    %437 = vmatpush.bf16.msra.mxu0 %v127
    %438 = vmatpush.bf16.msra.mxu0 %v126
    %439 = vmatpush.bf16.msra.mxu0 %v125
    %440 = vmatpush.bf16.msra.mxu0 %v124
    %441 = vmatpush.bf16.msra.mxu0 %v123
    %442 = vmatpush.bf16.msra.mxu0 %v122
    %443 = vmatpush.bf16.msra.mxu0 %v121
    %444 = vmatmul.bf16.gmra.mxu0 %v432
    %v445 = vpop.f32.mrf.mxu0
    %v446 = vadd.f32 0.0, %v445
    %v447 = vpop.f32.mrf.mxu0
    %448 = vdwg.mxu0
    %449 = vmatpush.bf16.msra.mxu0 %v188
    %450 = vmatpush.bf16.msra.mxu0 %v187
    %451 = vmatpush.bf16.msra.mxu0 %v186
    %452 = vmatpush.bf16.msra.mxu0 %v185
    %453 = vmatpush.bf16.msra.mxu0 %v184
    %454 = vmatpush.bf16.msra.mxu0 %v183
    %455 = vmatpush.bf16.msra.mxu0 %v182
    %456 = vmatpush.bf16.msra.mxu0 %v181
    %457 = vmatmul.bf16.gmra.mxu0 %v432
    %v458 = vpop.f32.mrf.mxu0
    %v459 = vadd.f32 %v446, %v458
    %v460 = vpop.f32.mrf.mxu0
    %461 = vdwg.mxu0
    %462 = vmatpush.bf16.msra.mxu0 %v188
    %463 = vmatpush.bf16.msra.mxu0 %v187
    %464 = vmatpush.bf16.msra.mxu0 %v186
    %465 = vmatpush.bf16.msra.mxu0 %v185
    %466 = vmatpush.bf16.msra.mxu0 %v184
    %467 = vmatpush.bf16.msra.mxu0 %v183
    %468 = vmatpush.bf16.msra.mxu0 %v182
    %469 = vmatpush.bf16.msra.mxu0 %v181
    %470 = vmatmul.bf16.gmra.mxu0 %v435
    %v471 = vpop.f32.mrf.mxu0
    %v472 = vadd.f32 0.0, %v471
    %v473 = vpop.f32.mrf.mxu0
    %474 = vdwg.mxu0
    %v475 = vadd.f32 %v459, %v472
    %v476 = vrot.slane %v131, 4
    %v478 = vmul.f32 %v475, %v476
    %v479 = vsel %vm225, %v478, 0.0
    %480 = vadd.xlane.f32.xlu0 %v479
    %v481 = vpop.xlane.xlu0 %480
    %v482 = vrot.slane %v481, 4
    %v483 = vadd.f32 %v481, %v482
    %v484 = vrot.slane %v483, 2
    %v485 = vadd.f32 %v483, %v484
    %v486 = vrot.slane %v485, 1
    %v487 = vadd.f32 %v485, %v486
    %s488 = vtos %v487
    %v489 = vstv %s488
    %v490 = vrcp.pop %v489
    %v491 = vmul.f32 %v489, %v490
    %v492 = vsub.f32 2.0, %v491
    %v493 = vmul.f32 %v490, %v492
    %v494 = vmul.f32 %v478, %v493
    %v495 = vpack.c.bf16 %v494, %v494
    %v496 = vunpack.c.l.bf16 %v495
    %v497 = vsub.f32 %v494, %v496
    %v498 = vpack.c.bf16 %v497, %v497
    %499 = vmatpush.bf16.msra.mxu0 %v128
    %500 = vmatpush.bf16.msra.mxu0 %v127
    %501 = vmatpush.bf16.msra.mxu0 %v126
    %502 = vmatpush.bf16.msra.mxu0 %v125
    %503 = vmatpush.bf16.msra.mxu0 %v124
    %504 = vmatpush.bf16.msra.mxu0 %v123
    %505 = vmatpush.bf16.msra.mxu0 %v122
    %506 = vmatpush.bf16.msra.mxu0 %v121
    %507 = vmatmul.bf16.gmra.mxu0 %v495
    %v508 = vpop.f32.mrf.mxu0
    %v509 = vadd.f32 0.0, %v508
    %v510 = vpop.f32.mrf.mxu0
    %511 = vdwg.mxu0
    %512 = vmatpush.bf16.msra.mxu0 %v188
    %513 = vmatpush.bf16.msra.mxu0 %v187
    %514 = vmatpush.bf16.msra.mxu0 %v186
    %515 = vmatpush.bf16.msra.mxu0 %v185
    %516 = vmatpush.bf16.msra.mxu0 %v184
    %517 = vmatpush.bf16.msra.mxu0 %v183
    %518 = vmatpush.bf16.msra.mxu0 %v182
    %519 = vmatpush.bf16.msra.mxu0 %v181
    %520 = vmatmul.bf16.gmra.mxu0 %v495
    %v521 = vpop.f32.mrf.mxu0
    %v522 = vadd.f32 %v509, %v521
    %v523 = vpop.f32.mrf.mxu0
    %524 = vdwg.mxu0
    %525 = vmatpush.bf16.msra.mxu0 %v188
    %526 = vmatpush.bf16.msra.mxu0 %v187
    %527 = vmatpush.bf16.msra.mxu0 %v186
    %528 = vmatpush.bf16.msra.mxu0 %v185
    %529 = vmatpush.bf16.msra.mxu0 %v184
    %530 = vmatpush.bf16.msra.mxu0 %v183
    %531 = vmatpush.bf16.msra.mxu0 %v182
    %532 = vmatpush.bf16.msra.mxu0 %v181
    %533 = vmatmul.bf16.gmra.mxu0 %v498
    %v534 = vpop.f32.mrf.mxu0
    %v535 = vadd.f32 0.0, %v534
    %v536 = vpop.f32.mrf.mxu0
    %537 = vdwg.mxu0
    %v538 = vadd.f32 %v522, %v535
    %v539 = vrot.slane %v131, 5
    %v541 = vmul.f32 %v538, %v539
    %v542 = vsel %vm225, %v541, 0.0
    %543 = vadd.xlane.f32.xlu0 %v542
    %v544 = vpop.xlane.xlu0 %543
    %v545 = vrot.slane %v544, 4
    %v546 = vadd.f32 %v544, %v545
    %v547 = vrot.slane %v546, 2
    %v548 = vadd.f32 %v546, %v547
    %v549 = vrot.slane %v548, 1
    %v550 = vadd.f32 %v548, %v549
    %s551 = vtos %v550
    %v552 = vstv %s551
    %v553 = vrcp.pop %v552
    %v554 = vmul.f32 %v552, %v553
    %v555 = vsub.f32 2.0, %v554
    %v556 = vmul.f32 %v553, %v555
    %v557 = vmul.f32 %v541, %v556
    %v558 = vpack.c.bf16 %v557, %v557
    %v559 = vunpack.c.l.bf16 %v558
    %v560 = vsub.f32 %v557, %v559
    %v561 = vpack.c.bf16 %v560, %v560
    %562 = vmatpush.bf16.msra.mxu0 %v128
    %563 = vmatpush.bf16.msra.mxu0 %v127
    %564 = vmatpush.bf16.msra.mxu0 %v126
    %565 = vmatpush.bf16.msra.mxu0 %v125
    %566 = vmatpush.bf16.msra.mxu0 %v124
    %567 = vmatpush.bf16.msra.mxu0 %v123
    %568 = vmatpush.bf16.msra.mxu0 %v122
    %569 = vmatpush.bf16.msra.mxu0 %v121
    %570 = vmatmul.bf16.gmra.mxu0 %v558
    %v571 = vpop.f32.mrf.mxu0
    %v572 = vadd.f32 0.0, %v571
    %v573 = vpop.f32.mrf.mxu0
    %574 = vdwg.mxu0
    %575 = vmatpush.bf16.msra.mxu0 %v188
    %576 = vmatpush.bf16.msra.mxu0 %v187
    %577 = vmatpush.bf16.msra.mxu0 %v186
    %578 = vmatpush.bf16.msra.mxu0 %v185
    %579 = vmatpush.bf16.msra.mxu0 %v184
    %580 = vmatpush.bf16.msra.mxu0 %v183
    %581 = vmatpush.bf16.msra.mxu0 %v182
    %582 = vmatpush.bf16.msra.mxu0 %v181
    %583 = vmatmul.bf16.gmra.mxu0 %v558
    %v584 = vpop.f32.mrf.mxu0
    %v585 = vadd.f32 %v572, %v584
    %v586 = vpop.f32.mrf.mxu0
    %587 = vdwg.mxu0
    %588 = vmatpush.bf16.msra.mxu0 %v188
    %589 = vmatpush.bf16.msra.mxu0 %v187
    %590 = vmatpush.bf16.msra.mxu0 %v186
    %591 = vmatpush.bf16.msra.mxu0 %v185
    %592 = vmatpush.bf16.msra.mxu0 %v184
    %593 = vmatpush.bf16.msra.mxu0 %v183
    %594 = vmatpush.bf16.msra.mxu0 %v182
    %595 = vmatpush.bf16.msra.mxu0 %v181
    %596 = vmatmul.bf16.gmra.mxu0 %v561
    %v597 = vpop.f32.mrf.mxu0
    %v598 = vadd.f32 0.0, %v597
    %v599 = vpop.f32.mrf.mxu0
    %600 = vdwg.mxu0
    %v601 = vadd.f32 %v585, %v598
    %v602 = vrot.slane %v131, 6
    %v604 = vmul.f32 %v601, %v602
    %v605 = vsel %vm225, %v604, 0.0
    %606 = vadd.xlane.f32.xlu0 %v605
    %v607 = vpop.xlane.xlu0 %606
    %v608 = vrot.slane %v607, 4
    %v609 = vadd.f32 %v607, %v608
    %v610 = vrot.slane %v609, 2
    %v611 = vadd.f32 %v609, %v610
    %v612 = vrot.slane %v611, 1
    %v613 = vadd.f32 %v611, %v612
    %s614 = vtos %v613
    %v615 = vstv %s614
    %v616 = vrcp.pop %v615
    %v617 = vmul.f32 %v615, %v616
    %v618 = vsub.f32 2.0, %v617
    %v619 = vmul.f32 %v616, %v618
    %v620 = vmul.f32 %v604, %v619
    %v621 = vpack.c.bf16 %v620, %v620
    %v622 = vunpack.c.l.bf16 %v621
    %v623 = vsub.f32 %v620, %v622
    %v624 = vpack.c.bf16 %v623, %v623
    %625 = vmatpush.bf16.msra.mxu0 %v128
    %626 = vmatpush.bf16.msra.mxu0 %v127
    %627 = vmatpush.bf16.msra.mxu0 %v126
    %628 = vmatpush.bf16.msra.mxu0 %v125
    %629 = vmatpush.bf16.msra.mxu0 %v124
    %630 = vmatpush.bf16.msra.mxu0 %v123
    %631 = vmatpush.bf16.msra.mxu0 %v122
    %632 = vmatpush.bf16.msra.mxu0 %v121
    %633 = vmatmul.bf16.gmra.mxu0 %v621
    %v634 = vpop.f32.mrf.mxu0
    %v635 = vadd.f32 0.0, %v634
    %v636 = vpop.f32.mrf.mxu0
    %637 = vdwg.mxu0
    %638 = vmatpush.bf16.msra.mxu0 %v188
    %639 = vmatpush.bf16.msra.mxu0 %v187
    %640 = vmatpush.bf16.msra.mxu0 %v186
    %641 = vmatpush.bf16.msra.mxu0 %v185
    %642 = vmatpush.bf16.msra.mxu0 %v184
    %643 = vmatpush.bf16.msra.mxu0 %v183
    %644 = vmatpush.bf16.msra.mxu0 %v182
    %645 = vmatpush.bf16.msra.mxu0 %v181
    %646 = vmatmul.bf16.gmra.mxu0 %v621
    %v647 = vpop.f32.mrf.mxu0
    %v648 = vadd.f32 %v635, %v647
    %v649 = vpop.f32.mrf.mxu0
    %650 = vdwg.mxu0
    %651 = vmatpush.bf16.msra.mxu0 %v188
    %652 = vmatpush.bf16.msra.mxu0 %v187
    %653 = vmatpush.bf16.msra.mxu0 %v186
    %654 = vmatpush.bf16.msra.mxu0 %v185
    %655 = vmatpush.bf16.msra.mxu0 %v184
    %656 = vmatpush.bf16.msra.mxu0 %v183
    %657 = vmatpush.bf16.msra.mxu0 %v182
    %658 = vmatpush.bf16.msra.mxu0 %v181
    %659 = vmatmul.bf16.gmra.mxu0 %v624
    %v660 = vpop.f32.mrf.mxu0
    %v661 = vadd.f32 0.0, %v660
    %v662 = vpop.f32.mrf.mxu0
    %663 = vdwg.mxu0
    %v664 = vadd.f32 %v648, %v661
    %v665 = vrot.slane %v131, 7
    %v667 = vmul.f32 %v664, %v665
    %v668 = vsel %vm225, %v667, 0.0
    %669 = vadd.xlane.f32.xlu0 %v668
    %v670 = vpop.xlane.xlu0 %669
    %v671 = vrot.slane %v670, 4
    %v672 = vadd.f32 %v670, %v671
    %v673 = vrot.slane %v672, 2
    %v674 = vadd.f32 %v672, %v673
    %v675 = vrot.slane %v674, 1
    %v676 = vadd.f32 %v674, %v675
    %s677 = vtos %v676
    %v678 = vstv %s677
    %v679 = vrcp.pop %v678
    %v680 = vmul.f32 %v678, %v679
    %v681 = vsub.f32 2.0, %v680
    %v682 = vmul.f32 %v679, %v681
    %v683 = vmul.f32 %v667, %v682
    %v685 = vrot.slane %v305, 7
    %v688 = vrot.slane %v368, 6
    %v691 = vrot.slane %v431, 5
    %v694 = vrot.slane %v494, 4
    %v697 = vrot.slane %v557, 3
    %v700 = vrot.slane %v620, 2
    %v703 = vrot.slane %v683, 1
    %v705 = vsel %vm225, %v241, %v685
    %vm706 = vcmask 1041408
    %v707 = vsel %vm706, %v705, %v688
    %vm708 = vcmask 1042432
    %v709 = vsel %vm708, %v707, %v691
    %vm710 = vcmask 1043456
    %v711 = vsel %vm710, %v709, %v694
    %vm712 = vcmask 1044480
    %v713 = vsel %vm712, %v711, %v697
    %vm714 = vcmask 1045504
    %v715 = vsel %vm714, %v713, %v700
    %vm716 = vcmask 1046528
    %v717 = vsel %vm716, %v715, %v703
    %718 = vst [vmem:[#allocation8] sm:$0xff] %v717
    %719 = vst [vmem:[#allocation2] sm:$0x1] %v683
    %v720 = vld [vmem:[#allocation8] sm:$0xff]
    %721 = vmatpush.xpose.msra.mxu0 0.0
    %722 = vmatpush.xpose.msra.mxu0 0.0
    %723 = vmatpush.xpose.msra.mxu0 0.0
    %724 = vmatpush.xpose.msra.mxu0 0.0
    %725 = vmatpush.xpose.msra.mxu0 0.0
    %726 = vmatpush.xpose.msra.mxu0 0.0
    %727 = vmatpush.xpose.msra.mxu0 0.0
    %728 = vmatpush.xpose.msra.mxu0 0.0
    %729 = vmatpush.xpose.msra.mxu0 0.0
    %730 = vmatpush.xpose.msra.mxu0 0.0
    %731 = vmatpush.xpose.msra.mxu0 0.0
    %732 = vmatpush.xpose.msra.mxu0 0.0
    %733 = vmatpush.xpose.msra.mxu0 0.0
    %734 = vmatpush.xpose.msra.mxu0 0.0
    %735 = vmatpush.xpose.msra.mxu0 0.0
    %v736 = vand.u32 %v720, 4294901760
    %737 = vmatpush.xpose.msra.mxu0 %v736
    %v738 = vand.u32 %v129, 4294901760
    %v739 = vsub.f32 %v129, %v738
    %v740 = vand.u32 %v739, 4294901760
    %v741 = vsub.f32 %v739, %v740
    %v742 = vand.u32 %v741, 4294901760
    %743 = vmatmul.f32.gmra.mxu0 %v742
    %v744 = vpop.f32.mrf.mxu0
    %v745 = vadd.f32 0.0, %v744
    %746 = vdwg.mxu0
    %747 = vmatpush.xpose.msra.mxu0 0.0
    %748 = vmatpush.xpose.msra.mxu0 0.0
    %749 = vmatpush.xpose.msra.mxu0 0.0
    %750 = vmatpush.xpose.msra.mxu0 0.0
    %751 = vmatpush.xpose.msra.mxu0 0.0
    %752 = vmatpush.xpose.msra.mxu0 0.0
    %753 = vmatpush.xpose.msra.mxu0 0.0
    %754 = vmatpush.xpose.msra.mxu0 0.0
    %755 = vmatpush.xpose.msra.mxu0 0.0
    %756 = vmatpush.xpose.msra.mxu0 0.0
    %757 = vmatpush.xpose.msra.mxu0 0.0
    %758 = vmatpush.xpose.msra.mxu0 0.0
    %759 = vmatpush.xpose.msra.mxu0 0.0
    %760 = vmatpush.xpose.msra.mxu0 0.0
    %761 = vmatpush.xpose.msra.mxu0 0.0
    %v762 = vand.u32 %v720, 4294901760
    %v763 = vsub.f32 %v720, %v762
    %v764 = vand.u32 %v763, 4294901760
    %v765 = vsub.f32 %v763, %v764
    %v766 = vand.u32 %v765, 4294901760
    %767 = vmatpush.xpose.msra.mxu0 %v766
    %v768 = vand.u32 %v129, 4294901760
    %769 = vmatmul.f32.gmra.mxu0 %v768
    %v770 = vpop.f32.mrf.mxu0
    %v771 = vadd.f32 %v745, %v770
    %772 = vdwg.mxu0
    %773 = vmatpush.xpose.msra.mxu0 0.0
    %774 = vmatpush.xpose.msra.mxu0 0.0
    %775 = vmatpush.xpose.msra.mxu0 0.0
    %776 = vmatpush.xpose.msra.mxu0 0.0
    %777 = vmatpush.xpose.msra.mxu0 0.0
    %778 = vmatpush.xpose.msra.mxu0 0.0
    %779 = vmatpush.xpose.msra.mxu0 0.0
    %780 = vmatpush.xpose.msra.mxu0 0.0
    %781 = vmatpush.xpose.msra.mxu0 0.0
    %782 = vmatpush.xpose.msra.mxu0 0.0
    %783 = vmatpush.xpose.msra.mxu0 0.0
    %784 = vmatpush.xpose.msra.mxu0 0.0
    %785 = vmatpush.xpose.msra.mxu0 0.0
    %786 = vmatpush.xpose.msra.mxu0 0.0
    %787 = vmatpush.xpose.msra.mxu0 0.0
    %v788 = vand.u32 %v720, 4294901760
    %v789 = vsub.f32 %v720, %v788
    %790 = vmatpush.xpose.msra.mxu0 %v789
    %v791 = vand.u32 %v129, 4294901760
    %v792 = vsub.f32 %v129, %v791
    %793 = vmatmul.f32.gmra.mxu0 %v792
    %v794 = vpop.f32.mrf.mxu0
    %v795 = vadd.f32 %v771, %v794
    %796 = vdwg.mxu0
    %797 = vmatpush.xpose.msra.mxu0 0.0
    %798 = vmatpush.xpose.msra.mxu0 0.0
    %799 = vmatpush.xpose.msra.mxu0 0.0
    %800 = vmatpush.xpose.msra.mxu0 0.0
    %801 = vmatpush.xpose.msra.mxu0 0.0
    %802 = vmatpush.xpose.msra.mxu0 0.0
    %803 = vmatpush.xpose.msra.mxu0 0.0
    %804 = vmatpush.xpose.msra.mxu0 0.0
    %805 = vmatpush.xpose.msra.mxu0 0.0
    %806 = vmatpush.xpose.msra.mxu0 0.0
    %807 = vmatpush.xpose.msra.mxu0 0.0
    %808 = vmatpush.xpose.msra.mxu0 0.0
    %809 = vmatpush.xpose.msra.mxu0 0.0
    %810 = vmatpush.xpose.msra.mxu0 0.0
    %811 = vmatpush.xpose.msra.mxu0 0.0
    %v812 = vand.u32 %v720, 4294901760
    %813 = vmatpush.xpose.msra.mxu0 %v812
    %v814 = vand.u32 %v129, 4294901760
    %v815 = vsub.f32 %v129, %v814
    %v816 = vand.u32 %v815, 4294901760
    %817 = vmatmul.f32.gmra.mxu0 %v816
    %v818 = vpop.f32.mrf.mxu0
    %v819 = vadd.f32 %v795, %v818
    %820 = vdwg.mxu0
    %821 = vmatpush.xpose.msra.mxu0 0.0
    %822 = vmatpush.xpose.msra.mxu0 0.0
    %823 = vmatpush.xpose.msra.mxu0 0.0
    %824 = vmatpush.xpose.msra.mxu0 0.0
    %825 = vmatpush.xpose.msra.mxu0 0.0
    %826 = vmatpush.xpose.msra.mxu0 0.0
    %827 = vmatpush.xpose.msra.mxu0 0.0
    %828 = vmatpush.xpose.msra.mxu0 0.0
    %829 = vmatpush.xpose.msra.mxu0 0.0
    %830 = vmatpush.xpose.msra.mxu0 0.0
    %831 = vmatpush.xpose.msra.mxu0 0.0
    %832 = vmatpush.xpose.msra.mxu0 0.0
    %833 = vmatpush.xpose.msra.mxu0 0.0
    %834 = vmatpush.xpose.msra.mxu0 0.0
    %835 = vmatpush.xpose.msra.mxu0 0.0
    %v836 = vand.u32 %v720, 4294901760
    %v837 = vsub.f32 %v720, %v836
    %v838 = vand.u32 %v837, 4294901760
    %839 = vmatpush.xpose.msra.mxu0 %v838
    %v840 = vand.u32 %v129, 4294901760
    %841 = vmatmul.f32.gmra.mxu0 %v840
    %v842 = vpop.f32.mrf.mxu0
    %v843 = vadd.f32 %v819, %v842
    %844 = vdwg.mxu0
    %845 = vmatpush.xpose.msra.mxu0 0.0
    %846 = vmatpush.xpose.msra.mxu0 0.0
    %847 = vmatpush.xpose.msra.mxu0 0.0
    %848 = vmatpush.xpose.msra.mxu0 0.0
    %849 = vmatpush.xpose.msra.mxu0 0.0
    %850 = vmatpush.xpose.msra.mxu0 0.0
    %851 = vmatpush.xpose.msra.mxu0 0.0
    %852 = vmatpush.xpose.msra.mxu0 0.0
    %853 = vmatpush.xpose.msra.mxu0 0.0
    %854 = vmatpush.xpose.msra.mxu0 0.0
    %855 = vmatpush.xpose.msra.mxu0 0.0
    %856 = vmatpush.xpose.msra.mxu0 0.0
    %857 = vmatpush.xpose.msra.mxu0 0.0
    %858 = vmatpush.xpose.msra.mxu0 0.0
    %859 = vmatpush.xpose.msra.mxu0 0.0
    %v860 = vand.u32 %v720, 4294901760
    %861 = vmatpush.xpose.msra.mxu0 %v860
    %v862 = vand.u32 %v129, 4294901760
    %863 = vmatmul.f32.gmra.mxu0 %v862
    %v864 = vpop.f32.mrf.mxu0
    %v865 = vadd.f32 %v843, %v864
    %866 = vdwg.mxu0
    %v867 = vadd.f32 %v720, 1e-10
    %v868 = vlog2.pop %v867
    %v869 = vmul.f32 %v868, 0.6931472
    %v870 = vmul.f32 %v720, %v869
    %871 = vmatpush.xpose.msra.mxu0 0.0
    %872 = vmatpush.xpose.msra.mxu0 0.0
    %873 = vmatpush.xpose.msra.mxu0 0.0
    %874 = vmatpush.xpose.msra.mxu0 0.0
    %875 = vmatpush.xpose.msra.mxu0 0.0
    %876 = vmatpush.xpose.msra.mxu0 0.0
    %877 = vmatpush.xpose.msra.mxu0 0.0
    %878 = vmatpush.xpose.msra.mxu0 0.0
    %879 = vmatpush.xpose.msra.mxu0 0.0
    %880 = vmatpush.xpose.msra.mxu0 0.0
    %881 = vmatpush.xpose.msra.mxu0 0.0
    %882 = vmatpush.xpose.msra.mxu0 0.0
    %883 = vmatpush.xpose.msra.mxu0 0.0
    %884 = vmatpush.xpose.msra.mxu0 0.0
    %885 = vmatpush.xpose.msra.mxu0 0.0
    %v886 = vand.u32 %v870, 4294901760
    %887 = vmatpush.xpose.msra.mxu0 %v886
    %888 = vmatmul.f32.gmra.mxu0 0.0
    %v889 = vpop.f32.mrf.mxu0
    %v890 = vadd.f32 0.0, %v889
    %891 = vdwg.mxu0
    %892 = vmatpush.xpose.msra.mxu0 0.0
    %893 = vmatpush.xpose.msra.mxu0 0.0
    %894 = vmatpush.xpose.msra.mxu0 0.0
    %895 = vmatpush.xpose.msra.mxu0 0.0
    %896 = vmatpush.xpose.msra.mxu0 0.0
    %897 = vmatpush.xpose.msra.mxu0 0.0
    %898 = vmatpush.xpose.msra.mxu0 0.0
    %899 = vmatpush.xpose.msra.mxu0 0.0
    %900 = vmatpush.xpose.msra.mxu0 0.0
    %901 = vmatpush.xpose.msra.mxu0 0.0
    %902 = vmatpush.xpose.msra.mxu0 0.0
    %903 = vmatpush.xpose.msra.mxu0 0.0
    %904 = vmatpush.xpose.msra.mxu0 0.0
    %905 = vmatpush.xpose.msra.mxu0 0.0
    %906 = vmatpush.xpose.msra.mxu0 0.0
    %v907 = vand.u32 %v870, 4294901760
    %v908 = vsub.f32 %v870, %v907
    %v909 = vand.u32 %v908, 4294901760
    %v910 = vsub.f32 %v908, %v909
    %v911 = vand.u32 %v910, 4294901760
    %912 = vmatpush.xpose.msra.mxu0 %v911
    %913 = vmatmul.f32.gmra.mxu0 1.0
    %v914 = vpop.f32.mrf.mxu0
    %v915 = vadd.f32 %v890, %v914
    %916 = vdwg.mxu0
    %917 = vmatpush.xpose.msra.mxu0 0.0
    %918 = vmatpush.xpose.msra.mxu0 0.0
    %919 = vmatpush.xpose.msra.mxu0 0.0
    %920 = vmatpush.xpose.msra.mxu0 0.0
    %921 = vmatpush.xpose.msra.mxu0 0.0
    %922 = vmatpush.xpose.msra.mxu0 0.0
    %923 = vmatpush.xpose.msra.mxu0 0.0
    %924 = vmatpush.xpose.msra.mxu0 0.0
    %925 = vmatpush.xpose.msra.mxu0 0.0
    %926 = vmatpush.xpose.msra.mxu0 0.0
    %927 = vmatpush.xpose.msra.mxu0 0.0
    %928 = vmatpush.xpose.msra.mxu0 0.0
    %929 = vmatpush.xpose.msra.mxu0 0.0
    %930 = vmatpush.xpose.msra.mxu0 0.0
    %931 = vmatpush.xpose.msra.mxu0 0.0
    %v932 = vand.u32 %v870, 4294901760
    %v933 = vsub.f32 %v870, %v932
    %934 = vmatpush.xpose.msra.mxu0 %v933
    %935 = vmatmul.f32.gmra.mxu0 0.0
    %v936 = vpop.f32.mrf.mxu0
    %v937 = vadd.f32 %v915, %v936
    %938 = vdwg.mxu0
    %939 = vmatpush.xpose.msra.mxu0 0.0
    %940 = vmatpush.xpose.msra.mxu0 0.0
    %941 = vmatpush.xpose.msra.mxu0 0.0
    %942 = vmatpush.xpose.msra.mxu0 0.0
    %943 = vmatpush.xpose.msra.mxu0 0.0
    %944 = vmatpush.xpose.msra.mxu0 0.0
    %945 = vmatpush.xpose.msra.mxu0 0.0
    %946 = vmatpush.xpose.msra.mxu0 0.0
    %947 = vmatpush.xpose.msra.mxu0 0.0
    %948 = vmatpush.xpose.msra.mxu0 0.0
    %949 = vmatpush.xpose.msra.mxu0 0.0
    %950 = vmatpush.xpose.msra.mxu0 0.0
    %951 = vmatpush.xpose.msra.mxu0 0.0
    %952 = vmatpush.xpose.msra.mxu0 0.0
    %953 = vmatpush.xpose.msra.mxu0 0.0
    %v954 = vand.u32 %v870, 4294901760
    %955 = vmatpush.xpose.msra.mxu0 %v954
    %956 = vmatmul.f32.gmra.mxu0 0.0
    %v957 = vpop.f32.mrf.mxu0
    %v958 = vadd.f32 %v937, %v957
    %959 = vdwg.mxu0
    %960 = vmatpush.xpose.msra.mxu0 0.0
    %961 = vmatpush.xpose.msra.mxu0 0.0
    %962 = vmatpush.xpose.msra.mxu0 0.0
    %963 = vmatpush.xpose.msra.mxu0 0.0
    %964 = vmatpush.xpose.msra.mxu0 0.0
    %965 = vmatpush.xpose.msra.mxu0 0.0
    %966 = vmatpush.xpose.msra.mxu0 0.0
    %967 = vmatpush.xpose.msra.mxu0 0.0
    %968 = vmatpush.xpose.msra.mxu0 0.0
    %969 = vmatpush.xpose.msra.mxu0 0.0
    %970 = vmatpush.xpose.msra.mxu0 0.0
    %971 = vmatpush.xpose.msra.mxu0 0.0
    %972 = vmatpush.xpose.msra.mxu0 0.0
    %973 = vmatpush.xpose.msra.mxu0 0.0
    %974 = vmatpush.xpose.msra.mxu0 0.0
    %v975 = vand.u32 %v870, 4294901760
    %v976 = vsub.f32 %v870, %v975
    %v977 = vand.u32 %v976, 4294901760
    %978 = vmatpush.xpose.msra.mxu0 %v977
    %979 = vmatmul.f32.gmra.mxu0 1.0
    %v980 = vpop.f32.mrf.mxu0
    %v981 = vadd.f32 %v958, %v980
    %982 = vdwg.mxu0
    %983 = vmatpush.xpose.msra.mxu0 0.0
    %984 = vmatpush.xpose.msra.mxu0 0.0
    %985 = vmatpush.xpose.msra.mxu0 0.0
    %986 = vmatpush.xpose.msra.mxu0 0.0
    %987 = vmatpush.xpose.msra.mxu0 0.0
    %988 = vmatpush.xpose.msra.mxu0 0.0
    %989 = vmatpush.xpose.msra.mxu0 0.0
    %990 = vmatpush.xpose.msra.mxu0 0.0
    %991 = vmatpush.xpose.msra.mxu0 0.0
    %992 = vmatpush.xpose.msra.mxu0 0.0
    %993 = vmatpush.xpose.msra.mxu0 0.0
    %994 = vmatpush.xpose.msra.mxu0 0.0
    %995 = vmatpush.xpose.msra.mxu0 0.0
    %996 = vmatpush.xpose.msra.mxu0 0.0
    %997 = vmatpush.xpose.msra.mxu0 0.0
    %v998 = vand.u32 %v870, 4294901760
    %999 = vmatpush.xpose.msra.mxu0 %v998
    %1000 = vmatmul.f32.gmra.mxu0 1.0
    %v1001 = vpop.f32.mrf.mxu0
    %v1002 = vadd.f32 %v981, %v1001
    %1003 = vdwg.mxu0
    %v1004 = vsub.f32 0.0, %v1002
    %v1006 = vrot.slane %v1004, 7
    %v1008 = vsel %vm225, %v865, %v1006
    %v1009 = vsel %vm706, %v1008, 0.0
    %vm1010 = vcmask 64512
    %1011 = vst.msk [vmem:[#allocation9] sm:$0xff] %vm1010, %v1009
    // Predicated region
    $region30: #{tpu_custom_call.1} parent=1 // pred_check
      _
    $region31: #{tpu_custom_call.1} parent=1 // pred_check_branch
      %1013 = sbr.rel (0) target = $region33
    $region32: #{tpu_custom_call.1} parent=1 // pred_region
      %1015 = vsyncadd [#allocation5], 0
      %s1017 = sshll.u32 [#allocation8], 4
      %s1018 = int_to_ptr.vmem [resolvable:$true] %s1017
      %s1019 = sshll.u32 %s4, 4
      %s1020 = int_to_ptr.hbm [resolvable:$true] %s1019
      %1022 = dma.vmem_to_hbm [thread:$0]  %s1018, 128, %s1020, [#allocation5]
    $region33: #{tpu_custom_call.1} parent=1 // pred_fallthru
      _
    // Predicated region
    $region34: #{tpu_custom_call.1} parent=1 // pred_check
      _
    $region35: #{tpu_custom_call.1} parent=1 // pred_check_branch
      %1024 = sbr.rel (0) target = $region37
    $region36: #{tpu_custom_call.1} parent=1 // pred_region
      %1026 = vsyncadd [#allocation10], 0
      %s1028 = sshll.u32 [#allocation9], 4
      %s1029 = int_to_ptr.vmem [resolvable:$true] %s1028
      %s1030 = sshll.u32 %s5, 4
      %s1031 = int_to_ptr.hbm [resolvable:$true] %s1030
      %1033 = dma.vmem_to_hbm [thread:$0]  %s1029, 128, %s1031, [#allocation10]
    $region37: #{tpu_custom_call.1} parent=1 // pred_fallthru
      _
    // Predicated region
    $region38: #{tpu_custom_call.1} parent=1 // pred_check
      _
    $region39: #{tpu_custom_call.1} parent=1 // pred_check_branch
      %1035 = sbr.rel (0) target = $region41
    $region40: #{tpu_custom_call.1} parent=1 // pred_region
      %1037 = dma.done [#allocation5], 128
    $region41: #{tpu_custom_call.1} parent=1 // pred_fallthru
      _
    // Predicated region
    $region42: #{tpu_custom_call.1} parent=1 // pred_check
      _
    $region43: #{tpu_custom_call.1} parent=1 // pred_check_branch
      %1039 = sbr.rel (0) target = $region45
    $region44: #{tpu_custom_call.1} parent=1 // pred_region
      %1041 = dma.done [#allocation10], 128
    $region45: #{tpu_custom_call.1} parent=1 // pred_fallthru
      _
    %1042 = vsyncpa [#allocation4], 1
    %1043 = vsyncpa [#allocation7], 1
    %1044 = vsyncpa [#allocation5], 1
    %1045 = vsyncpa [#allocation10], 1

</llo_original>
